<compile_context>
chip_gen: v7x
topology: tpu7x:2x2x1
jax: 0.10.0
libtpu: 0.0.40
codegen_flags: <defaults>
</compile_context>

<pallas_src>
import jax
import jax.numpy as jnp
import numpy as np
from jax.experimental import pallas as pl
from jax.experimental.pallas import tpu as pltpu

_LANE = 128
_MiB = 1024 * 1024


def ap_kernel(x_ref, len_ref, w1_ref, b1_ref, w2_ref, b2_ref, out_ref, attw_ref):
    """One Bt-batch slab per grid step.

    x_ref   : (Bt, L, H)  VMEM block (f32 or bf16)
    len_ref : (Bt, 1)     int32 lengths for this slab
    w1_ref  : (H, D) same dtype as x, b1_ref: (1, D) f32, w2_ref: (1, D) f32, b2_ref: (1, 1) f32
    out_ref : (Bt, 1)     pooled output, f32
    attw_ref: (Bt, L)     attention weights (lane-dense; reshaped to (B, L, 1) outside)
    """
    Bt, L, H = x_ref.shape
    D = w1_ref.shape[1]

    # ---- MXU: fold (Bt, L) into the M dimension -> one (Bt*L, H) @ (H, D) matmul ----
    x2 = x_ref[...].reshape(Bt * L, H)                 # layout-free when L % sublane == 0
    hidden = jnp.tanh(
        jnp.dot(x2, w1_ref[...], preferred_element_type=jnp.float32) + b1_ref[...]
    )                                                  # (Bt*L, D) f32
    hidden = hidden.reshape(Bt, L, D)

    # ---- q_layer: lane-reduce over D; result is (Bt, L) with L on the lane axis ----
    # (Kernel is HBM-bound; routing this through the MXU is only worth it if profiling
    # ever shows VALU/XLU slots binding.)
    logits = jnp.sum(hidden * w2_ref[...].reshape(1, 1, D), axis=-1) + b2_ref[0, 0]  # (Bt, L)

    # ---- additive 0/1 mask (literal semantics of `logits + att_mask`) ----
    pos = jax.lax.broadcasted_iota(jnp.int32, (Bt, L), 1)          # position along L (lanes)
    mask = (pos < len_ref[...]).astype(jnp.float32)                # (Bt, 1) broadcasts over L
    logits = logits + mask

    # ---- softmax over L (lane axis): EUP exp, approx reciprocal + one Newton step ----
    m = jnp.max(logits, axis=-1, keepdims=True)                    # (Bt, 1)
    e = jnp.exp(logits - m)                                        # (Bt, L)
    denom = jnp.sum(e, axis=-1, keepdims=True)                     # (Bt, 1)
    inv = pl.reciprocal(denom, approx=True)
    inv = inv * (2.0 - denom * inv)                                # Newton refine -> ~f32 accuracy
    att = e * inv                                                  # (Bt, L)

    # ---- output = sum_L(att_weights * logits) ----
    out_ref[...] = jnp.sum(att * logits, axis=-1, keepdims=True)   # (Bt, 1) f32
    attw_ref[...] = att.astype(attw_ref.dtype)


def _round_up(x, m):
    return ((x + m - 1) // m) * m


def _sublane(dtype):
    return {4: 8, 2: 16, 1: 32}[jnp.dtype(dtype).itemsize]


def _vmem_capacity_bytes():
    """Physical per-core VMEM; conservative (v7x) fallback if the query is unavailable."""
    try:
        return int(pltpu.get_tpu_info().vmem_capacity_bytes)
    except Exception:
        return 64 * _MiB


def _block_bytes(bt, L, H, D, x_dtype, attw_dtype):
    """Lane/sublane-padded VMEM footprint for one grid step (incl. double-buffering)."""
    xb = jnp.dtype(x_dtype).itemsize
    ab = jnp.dtype(attw_dtype).itemsize
    sl_x = _sublane(x_dtype)
    x_blk = 2 * bt * _round_up(L, sl_x) * _round_up(H, _LANE) * xb          # x slab, 2 bufs
    len_blk = 2 * _round_up(bt, 8) * _LANE * 4                              # lengths
    w1_blk = 2 * _round_up(H, sl_x) * _round_up(D, _LANE) * xb              # w1
    b_blks = 2 * 3 * 8 * _round_up(D, _LANE) * 4                            # b1, w2, b2 (f32)
    out_blk = 2 * _round_up(bt, 8) * _LANE * 4                              # pooled out
    attw_blk = 2 * _round_up(bt, 8) * _round_up(L, _LANE) * ab              # attn weights
    x2_copy = _round_up(bt * L, sl_x) * _round_up(H, _LANE) * xb            # folded-x (worst case)
    hidden = _round_up(bt * L, 8) * _round_up(D, _LANE) * 4                 # tanh output, f32
    vecs = 4 * _round_up(bt, 8) * _round_up(L, _LANE) * 4                   # logits/e/att/mask
    return x_blk + len_blk + w1_blk + b_blks + out_blk + attw_blk + x2_copy + hidden + vecs


def _pick_block_batch(B, L, H, D, x_dtype, attw_dtype, budget_bytes, prefer_multistep):
    """Largest per-step batch tile Bt that is legal and fits the (padded) VMEM budget."""
    # Bt must divide B and keep every 2-D BlockSpec's second-to-last dim a multiple of 8
    # or the full batch (TPU (8,128) block-shape rule).
    legal = [bt for bt in range(1, B + 1) if B % bt == 0 and (bt % 8 == 0 or bt == B)]
    fitting = [bt for bt in legal
               if _block_bytes(bt, L, H, D, x_dtype, attw_dtype) <= budget_bytes]
    if not fitting:
        # TODO(synk): for shapes where even the smallest legal Bt busts VMEM (v7x with huge
        # L*H), add an "arbitrary" H-reduction grid axis with a VMEM accumulator instead.
        raise ValueError(
            "AP Pallas kernel: no batch tile fits the VMEM budget "
            f"(B={B}, L={L}, H={H}, D={D}, budget={budget_bytes} bytes)."
        )
    if prefer_multistep:           # only on v7x-like chips (2 TensorCores share the grid)
        multi = [bt for bt in fitting if B // bt >= 2]
        if multi:
            fitting = multi
    return max(fitting)


def attentive_pooling(x, length, w1, b1, w2, b2, *, block_b=None, attw_dtype=jnp.float32):
    """x: (B, L, H) f32/bf16, length: (B,) int.

    Returns (output (B, 1) f32, att_weights (B, L, 1) attw_dtype).
    For best HBM bandwidth pass x (and w1) as bfloat16; accumulation stays f32.
    """
    B, L, H = x.shape
    D = w1.shape[1]

    # MXU operands share x's dtype; everything post-matmul is f32.
    w1 = w1.astype(x.dtype)
    b1 = b1.astype(jnp.float32)
    w2 = w2.astype(jnp.float32)
    b2 = b2.astype(jnp.float32)

    vmem_cap = _vmem_capacity_bytes()
    budget = min(int(vmem_cap * 0.78), vmem_cap - 24 * _MiB)      # ~100 MiB v5e/v6e, ~40 MiB v7x
    prefer_multistep = vmem_cap < 96 * _MiB                        # 2-TC (v7x) heuristic
    Bt = block_b if block_b is not None else _pick_block_batch(
        B, L, H, D, x.dtype, attw_dtype, budget, prefer_multistep)
    assert B % Bt == 0 and (Bt % 8 == 0 or Bt == B)
    vmem_limit = min(vmem_cap, budget + 8 * _MiB)

    length2 = length.astype(jnp.int32).reshape(B, 1)

    out, attw = pl.pallas_call(
        ap_kernel,
        grid=(B // Bt,),
        in_specs=[
            pl.BlockSpec((Bt, L, H), lambda g: (g, 0, 0)),  # x slab
            pl.BlockSpec((Bt, 1), lambda g: (g, 0)),        # lengths
            pl.BlockSpec((H, D), lambda g: (0, 0)),         # w1
            pl.BlockSpec((1, D), lambda g: (0, 0)),         # b1
            pl.BlockSpec((1, D), lambda g: (0, 0)),         # w2
            pl.BlockSpec((1, 1), lambda g: (0, 0)),         # b2
        ],
        out_specs=(
            pl.BlockSpec((Bt, 1), lambda g: (g, 0)),        # pooled output
            pl.BlockSpec((Bt, L), lambda g: (g, 0)),        # attention weights (lane-dense)
        ),
        out_shape=(
            jax.ShapeDtypeStruct((B, 1), jnp.float32),
            jax.ShapeDtypeStruct((B, L), attw_dtype),
        ),
        compiler_params=pltpu.CompilerParams(
            dimension_semantics=("parallel",),
            vmem_limit_bytes=vmem_limit,
        ),
    )(x, length2, w1, b1, w2, b2)

    return out, attw.reshape(B, L, 1)


def ap_reference(x, length, w1, b1, w2, b2):
    """Pure-JAX reference mirroring the (intended) PyTorch forward."""
    xf = x.astype(jnp.float32)
    hidden = jnp.tanh(xf @ w1.astype(jnp.float32) + b1[0])                 # (B, L, D)
    logits = jnp.einsum("bld,d->bl", hidden, w2[0])[..., None] + b2[0, 0]  # (B, L, 1)
    L = x.shape[1]
    mask = (jnp.arange(L)[None, :, None] < length[:, None, None]).astype(jnp.float32)
    logits = logits + mask
    att = jax.nn.softmax(logits, axis=1)
    out = jnp.sum(att * logits, axis=1)
    return out, att


if __name__ == "__main__":
    # Small shapes consistent with the module: B x L x H, input_dim=H, out_dim=D.
    B, L, H, D = 16, 16, 32, 16

    key = jax.random.PRNGKey(0)
    kx, kl, kw1, kb1, kw2, kb2 = jax.random.split(key, 6)

    x = jax.random.normal(kx, (B, L, H), dtype=jnp.float32)
    length = jax.random.randint(kl, (B,), 1, L + 1, dtype=jnp.int32)

    # Deterministic parameter init (PyTorch Linear stores weight as (out, in); we pass W^T).
    w1 = (jax.random.uniform(kw1, (H, D), jnp.float32) - 0.5) * (2.0 / np.sqrt(H))
    b1 = (jax.random.uniform(kb1, (1, D), jnp.float32) - 0.5) * (2.0 / np.sqrt(H))
    w2 = (jax.random.uniform(kw2, (1, D), jnp.float32) - 0.5) * (2.0 / np.sqrt(D))
    b2 = (jax.random.uniform(kb2, (1, 1), jnp.float32) - 0.5) * (2.0 / np.sqrt(D))

    # ---- f32 path: exact semantics check ----
    out, att = attentive_pooling(x, length, w1, b1, w2, b2)
    out = jax.block_until_ready(out)
    att = jax.block_until_ready(att)

    out_ref, att_ref = ap_reference(x, length, w1, b1, w2, b2)
    np.testing.assert_allclose(np.asarray(out), np.asarray(out_ref), rtol=2e-3, atol=2e-3)
    np.testing.assert_allclose(np.asarray(att), np.asarray(att_ref), rtol=2e-3, atol=2e-3)
    assert out.shape == (B, 1) and att.shape == (B, L, 1)

    # ---- bf16 path: halves HBM traffic (mem-bound); MXU accumulates in f32 ----
    x_bf = x.astype(jnp.bfloat16)
    w1_bf = w1.astype(jnp.bfloat16)
    out_bf, att_bf = attentive_pooling(x_bf, length, w1_bf, b1, w2, b2,
                                       attw_dtype=jnp.bfloat16)
    out_bf = jax.block_until_ready(out_bf)
    att_bf = jax.block_until_ready(att_bf)

    out_ref_bf, att_ref_bf = ap_reference(x_bf, length, w1_bf, b1, w2, b2)
    np.testing.assert_allclose(np.asarray(out_bf), np.asarray(out_ref_bf),
                               rtol=5e-3, atol=5e-3)
    np.testing.assert_allclose(np.asarray(att_bf, dtype=np.float32),
                               np.asarray(att_ref_bf), rtol=1e-2, atol=1e-2)

    print("KERNEL_OK")
</pallas_src>

<mosaic_0001>
module attributes {stable_mosaic.version = 11 : i64} {
  func.func @ap_kernel(%arg0: i32, %arg1: memref<8x16x32xf32, #tpu.memory_space<vmem>>, %arg2: memref<8x1xi32, #tpu.memory_space<vmem>>, %arg3: memref<32x16xf32, #tpu.memory_space<vmem>>, %arg4: memref<1x16xf32, #tpu.memory_space<vmem>>, %arg5: memref<1x16xf32, #tpu.memory_space<vmem>>, %arg6: memref<1x1xf32, #tpu.memory_space<vmem>>, %arg7: memref<8x1xf32, #tpu.memory_space<vmem>>, %arg8: memref<8x16xf32, #tpu.memory_space<vmem>>) attributes {dimension_semantics = [#tpu.dimension_semantics<parallel>], iteration_bounds = array<i64: 2>, scalar_prefetch = 0 : i64, scratch_operands = 0 : i64, tpu.core_type = #tpu.core_type<tc>, window_params = [{transform_indices = @transform_0, window_bounds = array<i64: 8, 16, 32>}, {transform_indices = @transform_1, window_bounds = array<i64: 8, 1>}, {pipeline_mode = #tpu.pipeline_mode<synchronous>, transform_indices = @transform_2, window_bounds = array<i64: 32, 16>}, {pipeline_mode = #tpu.pipeline_mode<synchronous>, transform_indices = @transform_3, window_bounds = array<i64: 1, 16>}, {pipeline_mode = #tpu.pipeline_mode<synchronous>, transform_indices = @transform_4, window_bounds = array<i64: 1, 16>}, {pipeline_mode = #tpu.pipeline_mode<synchronous>, transform_indices = @transform_5, window_bounds = array<i64: 1, 1>}, {transform_indices = @transform_6, window_bounds = array<i64: 8, 1>}, {transform_indices = @transform_7, window_bounds = array<i64: 8, 16>}]} {
    %c0 = arith.constant 0 : index
    %c0_0 = arith.constant 0 : index
    %c0_1 = arith.constant 0 : index
    %0 = vector.load %arg1[%c0, %c0_0, %c0_1] : memref<8x16x32xf32, #tpu.memory_space<vmem>>, vector<8x16x32xf32>
    %1 = vector.shape_cast %0 : vector<8x16x32xf32> to vector<128x32xf32>
    %c0_2 = arith.constant 0 : index
    %c0_3 = arith.constant 0 : index
    %2 = vector.load %arg3[%c0_2, %c0_3] : memref<32x16xf32, #tpu.memory_space<vmem>>, vector<32x16xf32>
    %cst = arith.constant dense<0.000000e+00> : vector<128x16xf32>
    %3 = tpu.matmul %1, %2, %cst {dimension_numbers = #tpu.dot_dimension_numbers<[1], [0], [0], [1], [0, 0, 1, 1], [], []>} : vector<128x32xf32>, vector<32x16xf32>, vector<128x16xf32> -> vector<128x16xf32>
    %c0_4 = arith.constant 0 : index
    %c0_5 = arith.constant 0 : index
    %4 = vector.load %arg4[%c0_4, %c0_5] : memref<1x16xf32, #tpu.memory_space<vmem>>, vector<1x16xf32>
    %5 = vector.broadcast %4 : vector<1x16xf32> to vector<128x16xf32>
    %6 = arith.addf %3, %5 : vector<128x16xf32>
    %7 = math.tanh %6 : vector<128x16xf32>
    %8 = vector.shape_cast %7 : vector<128x16xf32> to vector<8x16x16xf32>
    %c0_6 = arith.constant 0 : index
    %c0_7 = arith.constant 0 : index
    %9 = vector.load %arg5[%c0_6, %c0_7] : memref<1x16xf32, #tpu.memory_space<vmem>>, vector<1x16xf32>
    %10 = vector.shape_cast %9 : vector<1x16xf32> to vector<1x1x16xf32>
    %11 = vector.broadcast %10 : vector<1x1x16xf32> to vector<8x16x16xf32>
    %12 = arith.mulf %8, %11 : vector<8x16x16xf32>
    %cst_8 = arith.constant dense<0.000000e+00> : vector<8x16xf32>
    %13 = vector.multi_reduction <add>, %12, %cst_8 [2] : vector<8x16x16xf32> to vector<8x16xf32>
    %c0_9 = arith.constant 0 : index
    %c0_10 = arith.constant 0 : index
    %14 = vector.load %arg6[%c0_9, %c0_10] : memref<1x1xf32, #tpu.memory_space<vmem>>, vector<1x1xf32>
    %15 = vector.extract %14[0, 0] : f32 from vector<1x1xf32>
    %16 = vector.broadcast %15 : f32 to vector<8x16xf32>
    %17 = arith.addf %13, %16 : vector<8x16xf32>
    %18 = tpu.iota {dimensions = array<i32: 1>} : vector<8x16xi32>
    %c0_11 = arith.constant 0 : index
    %c0_12 = arith.constant 0 : index
    %19 = vector.load %arg2[%c0_11, %c0_12] : memref<8x1xi32, #tpu.memory_space<vmem>>, vector<8x1xi32>
    %20 = vector.broadcast %19 : vector<8x1xi32> to vector<8x16xi32>
    %21 = arith.cmpi slt, %18, %20 : vector<8x16xi32>
    %22 = arith.extui %21 : vector<8x16xi1> to vector<8x16xi32>
    %23 = arith.sitofp %22 : vector<8x16xi32> to vector<8x16xf32>
    %24 = arith.addf %17, %23 : vector<8x16xf32>
    %cst_13 = arith.constant dense<0xFF800000> : vector<8xf32>
    %25 = vector.multi_reduction <maximumf>, %24, %cst_13 [1] : vector<8x16xf32> to vector<8xf32>
    %26 = vector.shape_cast %25 : vector<8xf32> to vector<8x1xf32>
    %27 = vector.broadcast %26 : vector<8x1xf32> to vector<8x16xf32>
    %28 = arith.subf %24, %27 : vector<8x16xf32>
    %29 = math.exp %28 : vector<8x16xf32>
    %cst_14 = arith.constant dense<0.000000e+00> : vector<8xf32>
    %30 = vector.multi_reduction <add>, %29, %cst_14 [1] : vector<8x16xf32> to vector<8xf32>
    %31 = vector.shape_cast %30 : vector<8xf32> to vector<8x1xf32>
    %32 = tpu.reciprocal %31 {approx = true} : vector<8x1xf32> -> vector<8x1xf32>
    %33 = arith.mulf %31, %32 : vector<8x1xf32>
    %cst_15 = arith.constant 2.000000e+00 : f32
    %34 = vector.broadcast %cst_15 : f32 to vector<8x1xf32>
    %35 = arith.subf %34, %33 : vector<8x1xf32>
    %36 = arith.mulf %32, %35 : vector<8x1xf32>
    %37 = vector.broadcast %36 : vector<8x1xf32> to vector<8x16xf32>
    %38 = arith.mulf %29, %37 : vector<8x16xf32>
    %39 = arith.mulf %38, %24 : vector<8x16xf32>
    %cst_16 = arith.constant dense<0.000000e+00> : vector<8xf32>
    %40 = vector.multi_reduction <add>, %39, %cst_16 [1] : vector<8x16xf32> to vector<8xf32>
    %41 = vector.shape_cast %40 : vector<8xf32> to vector<8x1xf32>
    %c0_17 = arith.constant 0 : index
    %c0_18 = arith.constant 0 : index
    %42 = vector.load %arg7[%c0_17, %c0_18] : memref<8x1xf32, #tpu.memory_space<vmem>>, vector<8x1xf32>
    tpu.vector_store %arg7[%c0_17, %c0_18], %41 {strides = array<i32>} : memref<8x1xf32, #tpu.memory_space<vmem>>, vector<8x1xf32>,
    %c0_19 = arith.constant 0 : index
    %c0_20 = arith.constant 0 : index
    %43 = vector.load %arg8[%c0_19, %c0_20] : memref<8x16xf32, #tpu.memory_space<vmem>>, vector<8x16xf32>
    tpu.vector_store %arg8[%c0_19, %c0_20], %38 {strides = array<i32>} : memref<8x16xf32, #tpu.memory_space<vmem>>, vector<8x16xf32>,
    return
  }
  func.func @transform_0(%arg0: i32) -> (i32, i32, i32) {
    %c0_i32 = arith.constant 0 : i32
    %c0_i32_0 = arith.constant 0 : i32
    %c0_i32_1 = arith.constant 0 : i32
    return %arg0, %c0_i32, %c0_i32_0 : i32, i32, i32
  }
  func.func @transform_1(%arg0: i32) -> (i32, i32) {
    %c0_i32 = arith.constant 0 : i32
    %c0_i32_0 = arith.constant 0 : i32
    return %arg0, %c0_i32 : i32, i32
  }
  func.func @transform_2(%arg0: i32) -> (i32, i32) {
    %c0_i32 = arith.constant 0 : i32
    %c0_i32_0 = arith.constant 0 : i32
    %c0_i32_1 = arith.constant 0 : i32
    return %c0_i32, %c0_i32_0 : i32, i32
  }
  func.func @transform_3(%arg0: i32) -> (i32, i32) {
    %c0_i32 = arith.constant 0 : i32
    %c0_i32_0 = arith.constant 0 : i32
    %c0_i32_1 = arith.constant 0 : i32
    return %c0_i32, %c0_i32_0 : i32, i32
  }
  func.func @transform_4(%arg0: i32) -> (i32, i32) {
    %c0_i32 = arith.constant 0 : i32
    %c0_i32_0 = arith.constant 0 : i32
    %c0_i32_1 = arith.constant 0 : i32
    return %c0_i32, %c0_i32_0 : i32, i32
  }
  func.func @transform_5(%arg0: i32) -> (i32, i32) {
    %c0_i32 = arith.constant 0 : i32
    %c0_i32_0 = arith.constant 0 : i32
    %c0_i32_1 = arith.constant 0 : i32
    return %c0_i32, %c0_i32_0 : i32, i32
  }
  func.func @transform_6(%arg0: i32) -> (i32, i32) {
    %c0_i32 = arith.constant 0 : i32
    %c0_i32_0 = arith.constant 0 : i32
    return %arg0, %c0_i32 : i32, i32
  }
  func.func @transform_7(%arg0: i32) -> (i32, i32) {
    %c0_i32 = arith.constant 0 : i32
    %c0_i32_0 = arith.constant 0 : i32
    return %arg0, %c0_i32 : i32, i32
  }
}

</mosaic_0001>

<llo_original>
// kernel: tpu_custom_call.1
$region0: #{tpu_custom_call.1}
  #allocation0 [shape = 'u32[]', space=smem, size = 0x4, offset = 0x4, fixed_abs, tag = 'smem constant byte address 0x4 - core index']
  #allocation1 [shape = 'u32[144,128]{1,0:T(1,128)}', space=vmem, size = 0x12000, scoped, tag = 'internal scratch']
  #allocation2 [shape = 'f32[1,1]{1,0:T(1,128)S(1)}', space=vmem, size = 0x200, scoped, tag = 'scoped memory for tpu_custom_call.1']
  %s0 = inlined_call_operand.hbm [shape: f32[16,16,32], index: 0, kind: input, shape index: {}]
  %s1 = inlined_call_operand.vmem [shape: s32[16,1], index: 1, kind: input, shape index: {}]
  %s2 = inlined_call_operand.vmem [shape: f32[32,16], index: 2, kind: input, shape index: {}]
  %s3 = inlined_call_operand.vmem [shape: f32[1,16], index: 3, kind: input, shape index: {}]
  %s4 = inlined_call_operand.vmem [shape: f32[1,16], index: 4, kind: input, shape index: {}]
  %s5 = inlined_call_operand.<no memory space> [shape: f32[1,1], index: 5, kind: input, shape index: {}]
  %s6 = inlined_call_operand.vmem [shape: f32[16,1], index: 6, kind: output, shape index: {0}]
  %s7 = inlined_call_operand.hbm [shape: f32[16,16], index: 7, kind: output, shape index: {1}]
  %8 = xla_tuple %s6, %s7
  %s9 = sld [smem:[#allocation0]]
  $region69: #{tpu_custom_call.1} parent=0
    _
  %s11 = ssub.s32 1, %s9
  %s12 = scalar_select 0, %s11, %s9
  %v13 = vstv %s5
  %14 = vst [vmem:[#allocation2] sm:$0x1] %v13
  $region1: #{tpu_custom_call.1} parent=0
    #allocation3 [shape = 'u8[131072]{0}', space=vmem, size = 0x20000, scoped, tag = 'input window, operand 0']
    #allocation4 [shape = 's32[2]{0}', space=sflag, size = 0x8, scoped, tag = 'scoped memory for tpu_custom_call.1']
    #allocation5 [shape = 's32[2]{0}', space=sflag, size = 0x8, scoped, tag = 'scoped memory for tpu_custom_call.1']
    #allocation6 [shape = 'u8[8192]{0}', space=vmem, size = 0x2000, scoped, tag = 'output window, operand 1']
    %15 = vsyncpa [#allocation4], 0
    %s16 = scalar_lea.sflag [#allocation4], 1
    %17 = vsyncpa %s16, 0
    %18 = vsyncpa [#allocation5], 0
    %s19 = scalar_lea.sflag [#allocation5], 1
    %20 = vsyncpa %s19, 0
    loop: start=0, step=1, limit=4
    $region2: #{tpu_custom_call.1} parent=1 // loop_pre_header
      _
    $region3: #{tpu_custom_call.1} parent=1 // loop_header
      %s22 = sphi 0, %s26
      %p23 = scmp.ge.s32.totalorder %s22, 4
      %s32 = sphi 0, %s34
      %s35 = sphi 0, %s32
      %s36 = sphi 0, %s35
      %s52 = sphi 0, %s36
      %s58 = sphi 0, %s60
      %s61 = sphi 0, %s58
      %s62 = sphi 0, %s61
      %s78 = sphi 0, %s62
      %s82 = sphi 0, %s82
      %s84 = sphi 0, %s82
      %s85 = sphi 0, %s84
      %s99 = sphi 0, %s85
      %s103 = sphi 0, %s103
      %s105 = sphi 0, %s103
      %s106 = sphi 0, %s105
      %s120 = sphi 0, %s106
      %s124 = sphi 0, %s124
      %s126 = sphi 0, %s124
      %s127 = sphi 0, %s126
      %s141 = sphi 0, %s127
      %s145 = sphi 0, %s145
      %s147 = sphi 0, %s145
      %s148 = sphi 0, %s147
      %s162 = sphi 0, %s148
      %s168 = sphi 0, %s170
      %s171 = sphi 0, %s168
      %s172 = sphi 0, %s171
      %s188 = sphi 0, %s172
      %s194 = sphi 0, %s196
      %s197 = sphi 0, %s194
      %s198 = sphi 0, %s197
      %s214 = sphi 0, %s198
    $region4: #{tpu_custom_call.1} parent=1 // loop_header_branch
      %25 = sbr.rel (%p23) target = $region8
    $region5: #{tpu_custom_call.1} parent=1 // loop_body
      %s27 = ssub.s32 %s22, 1
      %s28 = ssub.s32 %s22, 2
      %s29 = sadd.s32 %s22, 1
      %s30 = ssub.s32 %s22, %s29
      %p31 = scmp.eq.s32.totalorder %s30, 0
      %s33 = sadd.s32 %s32, 1
      %s34 = scalar_select %p31, %s32, %s33
      %p37 = pneg %p31
      %p38 = scmp.eq.s32.totalorder %s22, 1
      %p39 = por %p37, %p38
      %p40 = scmp.ne.s32.totalorder %s32, %s35
      %p41 = scmp.eq.s32.totalorder %s22, 0
      %p42 = por %p40, %p41
      %p43 = scmp.ne.s32.totalorder %s32, %s35
      %p44 = scmp.eq.s32.totalorder %s27, 1
      %p45 = por %p43, %p44
      %p46 = scmp.ne.s32.totalorder %s35, %s36
      %p47 = scmp.eq.s32.totalorder %s27, 0
      %p48 = por %p46, %p47
      %p49 = scmp.ne.s32.totalorder %s35, %s36
      %p50 = scmp.eq.s32.totalorder %s28, 1
      %p51 = por %p49, %p50
      %p53 = scmp.ne.s32.totalorder %s36, %s52
      %p54 = scmp.eq.s32.totalorder %s28, 0
      %p55 = por %p53, %p54
      %s56 = ssub.s32 %s22, %s29
      %p57 = scmp.eq.s32.totalorder %s56, 0
      %s59 = sadd.s32 %s58, 1
      %s60 = scalar_select %p57, %s58, %s59
      %p63 = pneg %p57
      %p64 = scmp.eq.s32.totalorder %s22, 1
      %p65 = por %p63, %p64
      %p66 = scmp.ne.s32.totalorder %s58, %s61
      %p67 = scmp.eq.s32.totalorder %s22, 0
      %p68 = por %p66, %p67
      %p69 = scmp.ne.s32.totalorder %s58, %s61
      %p70 = scmp.eq.s32.totalorder %s27, 1
      %p71 = por %p69, %p70
      %p72 = scmp.ne.s32.totalorder %s61, %s62
      %p73 = scmp.eq.s32.totalorder %s27, 0
      %p74 = por %p72, %p73
      %p75 = scmp.ne.s32.totalorder %s61, %s62
      %p76 = scmp.eq.s32.totalorder %s28, 1
      %p77 = por %p75, %p76
      %p79 = scmp.ne.s32.totalorder %s62, %s78
      %p80 = scmp.eq.s32.totalorder %s28, 0
      %p81 = por %p79, %p80
      %s83 = sadd.s32 %s82, 1
      %p86 = scmp.eq.s32.totalorder %s22, 1
      %p87 = scmp.ne.s32.totalorder %s82, %s84
      %p88 = scmp.eq.s32.totalorder %s22, 0
      %p89 = por %p87, %p88
      %p90 = scmp.ne.s32.totalorder %s82, %s84
      %p91 = scmp.eq.s32.totalorder %s27, 1
      %p92 = por %p90, %p91
      %p93 = scmp.ne.s32.totalorder %s84, %s85
      %p94 = scmp.eq.s32.totalorder %s27, 0
      %p95 = por %p93, %p94
      %p96 = scmp.ne.s32.totalorder %s84, %s85
      %p97 = scmp.eq.s32.totalorder %s28, 1
      %p98 = por %p96, %p97
      %p100 = scmp.ne.s32.totalorder %s85, %s99
      %p101 = scmp.eq.s32.totalorder %s28, 0
      %p102 = por %p100, %p101
      %s104 = sadd.s32 %s103, 1
      %p107 = scmp.eq.s32.totalorder %s22, 1
      %p108 = scmp.ne.s32.totalorder %s103, %s105
      %p109 = scmp.eq.s32.totalorder %s22, 0
      %p110 = por %p108, %p109
      %p111 = scmp.ne.s32.totalorder %s103, %s105
      %p112 = scmp.eq.s32.totalorder %s27, 1
      %p113 = por %p111, %p112
      %p114 = scmp.ne.s32.totalorder %s105, %s106
      %p115 = scmp.eq.s32.totalorder %s27, 0
      %p116 = por %p114, %p115
      %p117 = scmp.ne.s32.totalorder %s105, %s106
      %p118 = scmp.eq.s32.totalorder %s28, 1
      %p119 = por %p117, %p118
      %p121 = scmp.ne.s32.totalorder %s106, %s120
      %p122 = scmp.eq.s32.totalorder %s28, 0
      %p123 = por %p121, %p122
      %s125 = sadd.s32 %s124, 1
      %p128 = scmp.eq.s32.totalorder %s22, 1
      %p129 = scmp.ne.s32.totalorder %s124, %s126
      %p130 = scmp.eq.s32.totalorder %s22, 0
      %p131 = por %p129, %p130
      %p132 = scmp.ne.s32.totalorder %s124, %s126
      %p133 = scmp.eq.s32.totalorder %s27, 1
      %p134 = por %p132, %p133
      %p135 = scmp.ne.s32.totalorder %s126, %s127
      %p136 = scmp.eq.s32.totalorder %s27, 0
      %p137 = por %p135, %p136
      %p138 = scmp.ne.s32.totalorder %s126, %s127
      %p139 = scmp.eq.s32.totalorder %s28, 1
      %p140 = por %p138, %p139
      %p142 = scmp.ne.s32.totalorder %s127, %s141
      %p143 = scmp.eq.s32.totalorder %s28, 0
      %p144 = por %p142, %p143
      %s146 = sadd.s32 %s145, 1
      %p149 = scmp.eq.s32.totalorder %s22, 1
      %p150 = scmp.ne.s32.totalorder %s145, %s147
      %p151 = scmp.eq.s32.totalorder %s22, 0
      %p152 = por %p150, %p151
      %p153 = scmp.ne.s32.totalorder %s145, %s147
      %p154 = scmp.eq.s32.totalorder %s27, 1
      %p155 = por %p153, %p154
      %p156 = scmp.ne.s32.totalorder %s147, %s148
      %p157 = scmp.eq.s32.totalorder %s27, 0
      %p158 = por %p156, %p157
      %p159 = scmp.ne.s32.totalorder %s147, %s148
      %p160 = scmp.eq.s32.totalorder %s28, 1
      %p161 = por %p159, %p160
      %p163 = scmp.ne.s32.totalorder %s148, %s162
      %p164 = scmp.eq.s32.totalorder %s28, 0
      %p165 = por %p163, %p164
      %s166 = ssub.s32 %s22, %s29
      %p167 = scmp.eq.s32.totalorder %s166, 0
      %s169 = sadd.s32 %s168, 1
      %s170 = scalar_select %p167, %s168, %s169
      %p173 = pneg %p167
      %p174 = scmp.eq.s32.totalorder %s22, 1
      %p175 = por %p173, %p174
      %p176 = scmp.ne.s32.totalorder %s168, %s171
      %p177 = scmp.eq.s32.totalorder %s22, 0
      %p178 = por %p176, %p177
      %p179 = scmp.ne.s32.totalorder %s168, %s171
      %p180 = scmp.eq.s32.totalorder %s27, 1
      %p181 = por %p179, %p180
      %p182 = scmp.ne.s32.totalorder %s171, %s172
      %p183 = scmp.eq.s32.totalorder %s27, 0
      %p184 = por %p182, %p183
      %p185 = scmp.ne.s32.totalorder %s171, %s172
      %p186 = scmp.eq.s32.totalorder %s28, 1
      %p187 = por %p185, %p186
      %p189 = scmp.ne.s32.totalorder %s172, %s188
      %p190 = scmp.eq.s32.totalorder %s28, 0
      %p191 = por %p189, %p190
      %s192 = ssub.s32 %s22, %s29
      %p193 = scmp.eq.s32.totalorder %s192, 0
      %s195 = sadd.s32 %s194, 1
      %s196 = scalar_select %p193, %s194, %s195
      %p199 = pneg %p193
      %p200 = scmp.eq.s32.totalorder %s22, 1
      %p201 = por %p199, %p200
      %p202 = scmp.ne.s32.totalorder %s194, %s197
      %p203 = scmp.eq.s32.totalorder %s22, 0
      %p204 = por %p202, %p203
      %p205 = scmp.ne.s32.totalorder %s194, %s197
      %p206 = scmp.eq.s32.totalorder %s27, 1
      %p207 = por %p205, %p206
      %p208 = scmp.ne.s32.totalorder %s197, %s198
      %p209 = scmp.eq.s32.totalorder %s27, 0
      %p210 = por %p208, %p209
      %p211 = scmp.ne.s32.totalorder %s197, %s198
      %p212 = scmp.eq.s32.totalorder %s28, 1
      %p213 = por %p211, %p212
      %p215 = scmp.ne.s32.totalorder %s198, %s214
      %p216 = scmp.eq.s32.totalorder %s28, 0
      %p217 = por %p215, %p216
      %p218 = scmp.le.s32.totalorder 1, %s22
      %p219 = scmp.lt.s32.totalorder %s22, 3
      %p220 = pnand %p218, %p219
      %p221 = pneg %p220
      // Predicated region
      $region9: #{tpu_custom_call.1} parent=5 // pred_check
        _
      $region10: #{tpu_custom_call.1} parent=5 // pred_check_branch
        %223 = sbr.rel (%p220) target = $region12
      $region11: #{tpu_custom_call.1} parent=5 // pred_region
        %s224 = ssub.s32 %s22, 1
        // Predicated region
        $region13: #{tpu_custom_call.1} parent=11 // pred_check
          %p225 = pneg %p95
        $region14: #{tpu_custom_call.1} parent=11 // pred_check_branch
          %227 = sbr.rel (%p225) target = $region16
        $region15: #{tpu_custom_call.1} parent=11 // pred_region
          _
        $region16: #{tpu_custom_call.1} parent=11 // pred_fallthru
          _
        // Predicated region
        $region17: #{tpu_custom_call.1} parent=11 // pred_check
          %p228 = pneg %p116
        $region18: #{tpu_custom_call.1} parent=11 // pred_check_branch
          %230 = sbr.rel (%p228) target = $region20
        $region19: #{tpu_custom_call.1} parent=11 // pred_region
          _
        $region20: #{tpu_custom_call.1} parent=11 // pred_fallthru
          _
        // Predicated region
        $region21: #{tpu_custom_call.1} parent=11 // pred_check
          %p231 = pneg %p137
        $region22: #{tpu_custom_call.1} parent=11 // pred_check_branch
          %233 = sbr.rel (%p231) target = $region24
        $region23: #{tpu_custom_call.1} parent=11 // pred_region
          _
        $region24: #{tpu_custom_call.1} parent=11 // pred_fallthru
          _
        // Predicated region
        $region25: #{tpu_custom_call.1} parent=11 // pred_check
          %p234 = pneg %p158
        $region26: #{tpu_custom_call.1} parent=11 // pred_check_branch
          %236 = sbr.rel (%p234) target = $region28
        $region27: #{tpu_custom_call.1} parent=11 // pred_region
          _
        $region28: #{tpu_custom_call.1} parent=11 // pred_fallthru
          _
      $region12: #{tpu_custom_call.1} parent=5 // pred_fallthru
        _
      %p237 = scmp.lt.s32.totalorder %s22, 2
      // Predicated region
      $region29: #{tpu_custom_call.1} parent=5 // pred_check
        %p238 = pneg %p237
      $region30: #{tpu_custom_call.1} parent=5 // pred_check_branch
        %240 = sbr.rel (%p238) target = $region32
      $region31: #{tpu_custom_call.1} parent=5 // pred_region
        // Predicated region
        $region33: #{tpu_custom_call.1} parent=31 // pred_check
          %p241 = pneg %p42
        $region34: #{tpu_custom_call.1} parent=31 // pred_check_branch
          %243 = sbr.rel (%p241) target = $region36
        $region35: #{tpu_custom_call.1} parent=31 // pred_region
          %s244 = sand.u32 %s32, 1
          %s245 = scalar_lea.sflag [#allocation4], %s244
          %s246 = sand.u32 %s32, 1
          %s247 = smul.addr %s246, 128
          %s248 = scalar_lea.vmem [#allocation3], %s247
          %s249 = smul.u32 8, %s22
          %s251 = ssub.s32 2048, 2048
          %252 = vsyncadd %s245, %s251
          %s253 = smul.addr %s249, 2
          %s254 = smul.addr %s253, 128
          %s255 = scalar_lea.hbm %s0, %s254
          %s256 = sshll.u32 %s248, 4
          %s257 = int_to_ptr.vmem [resolvable:$true] %s256
          %262 = dma.hbm_to_vmem [thread:$0]  %s255, 2048, %s257, %s245, 128, 128, 8
        $region36: #{tpu_custom_call.1} parent=31 // pred_fallthru
          _
        // Predicated region
        $region37: #{tpu_custom_call.1} parent=31 // pred_check
          %p263 = pneg %p68
        $region38: #{tpu_custom_call.1} parent=31 // pred_check_branch
          %265 = sbr.rel (%p263) target = $region40
        $region39: #{tpu_custom_call.1} parent=31 // pred_region
          %p266 = scmp.lt.s32.totalorder %s22, 1
          %s267 = scalar_select %p266, %s22, 1
          %s268 = smul.addr %s267, 8
          %s269 = scalar_lea.vmem %s1, %s268
        $region40: #{tpu_custom_call.1} parent=31 // pred_fallthru
          _
      $region32: #{tpu_custom_call.1} parent=5 // pred_fallthru
        _
      %p270 = scmp.le.s32.totalorder 1, %s22
      %p271 = scmp.lt.s32.totalorder %s22, 3
      %p272 = pnand %p270, %p271
      %p273 = pneg %p272
      // Predicated region
      $region41: #{tpu_custom_call.1} parent=5 // pred_check
        _
      $region42: #{tpu_custom_call.1} parent=5 // pred_check_branch
        %275 = sbr.rel (%p272) target = $region44
      $region43: #{tpu_custom_call.1} parent=5 // pred_region
        %s276 = ssub.s32 %s22, 1
        %s277 = sand.u32 %s35, 1
        %s278 = scalar_lea.sflag [#allocation4], %s277
        %s279 = sand.u32 %s35, 1
        %s280 = smul.addr %s279, 128
        %s281 = scalar_lea.vmem [#allocation3], %s280
        // Predicated region
        $region45: #{tpu_custom_call.1} parent=43 // pred_check
          %p282 = pneg %p48
        $region46: #{tpu_custom_call.1} parent=43 // pred_check_branch
          %284 = sbr.rel (%p282) target = $region48
        $region47: #{tpu_custom_call.1} parent=43 // pred_region
          %285 = dma.done %s278, 2048
        $region48: #{tpu_custom_call.1} parent=43 // pred_fallthru
          _
        %s286 = sand.u32 %s35, 1
        %s287 = scalar_lea.sflag [#allocation4], %s286
        %s288 = sand.u32 %s35, 1
        %s289 = smul.addr %s288, 128
        %s290 = scalar_lea.vmem [#allocation3], %s289
        %p291 = pneg %p48
        %p292 = pneg %p45
        %p293 = scmp.lt.s32.totalorder %s27, 1
        %s294 = scalar_select %p293, %s27, 1
        %s295 = smul.addr %s294, 8
        %s296 = scalar_lea.vmem %s1, %s295
        %p297 = pneg %p74
        %p298 = pneg %p71
        %p299 = pneg %p95
        %p300 = pneg %p92
        %p301 = pneg %p116
        %p302 = pneg %p113
        %p303 = pneg %p137
        %p304 = pneg %p134
        %p305 = pneg %p158
        %p306 = pneg %p155
        %p307 = pneg %p184
        %p308 = pneg %p181
        %p309 = scmp.lt.s32.totalorder %s27, 1
        %s310 = scalar_select %p309, %s27, 1
        %s311 = smul.addr %s310, 8
        %s312 = scalar_lea.vmem %s6, %s311
        %p313 = pneg %p210
        %p314 = pneg %p207
        %s315 = sand.u32 %s197, 1
        %s316 = scalar_lea.sflag [#allocation5], %s315
        %s317 = sand.u32 %s197, 1
        %s318 = smul.addr %s317, 8
        %s319 = scalar_lea.vmem [#allocation6], %s318
        %s320 = smul.u32 8, %s27
        %p321 = scmp.lt.s32.totalorder %s27, 1
        %s322 = scalar_select %p321, %s27, 1
        %s323 = smul.addr %s322, 8
        %s324 = scalar_lea.vmem %s1, %s323
        %p325 = scmp.lt.s32.totalorder %s27, 1
        %s326 = scalar_select %p325, %s27, 1
        %s327 = smul.addr %s326, 8
        %s328 = scalar_lea.vmem %s6, %s327
        %v329 = vld [vmem:[%s281] sm:$0xff]
        %v330 = vld [vmem:[%s281 + $0x8] sm:$0xff]
        %v331 = vld [vmem:[%s281 + $0x10] sm:$0xff]
        %v332 = vld [vmem:[%s281 + $0x18] sm:$0xff]
        %v333 = vld [vmem:[%s281 + $0x20] sm:$0xff]
        %v334 = vld [vmem:[%s281 + $0x28] sm:$0xff]
        %v335 = vld [vmem:[%s281 + $0x30] sm:$0xff]
        %v336 = vld [vmem:[%s281 + $0x38] sm:$0xff]
        %v337 = vld [vmem:[%s281 + $0x40] sm:$0xff]
        %v338 = vld [vmem:[%s281 + $0x48] sm:$0xff]
        %v339 = vld [vmem:[%s281 + $0x50] sm:$0xff]
        %v340 = vld [vmem:[%s281 + $0x58] sm:$0xff]
        %v341 = vld [vmem:[%s281 + $0x60] sm:$0xff]
        %v342 = vld [vmem:[%s281 + $0x68] sm:$0xff]
        %v343 = vld [vmem:[%s281 + $0x70] sm:$0xff]
        %v344 = vld [vmem:[%s281 + $0x78] sm:$0xff]
        %v345 = vld [vmem:[%s2] sm:$0xff]
        %v346 = vld [vmem:[%s2 + $0x8] sm:$0xff]
        %v347 = vld [vmem:[%s2 + $0x10] sm:$0xff]
        %v348 = vld [vmem:[%s2 + $0x18] sm:$0xff]
        %v349 = vld [vmem:[%s3] sm:$0x1]
        %v351 = vlaneseq
        %v352 = vshrl.u32 %v351, 7
        %v353 = vsub.s32 0, %v352
        %v354 = vrot.slane %v349, %v353
        %vm356 = vcmask 261120
        %v358 = vsel %vm356, %v329, 0
        %v361 = vsel %vm356, %v330, 0
        %v364 = vsel %vm356, %v331, 0
        %v367 = vsel %vm356, %v332, 0
        %v370 = vsel %vm356, %v333, 0
        %v373 = vsel %vm356, %v334, 0
        %v376 = vsel %vm356, %v335, 0
        %v379 = vsel %vm356, %v336, 0
        %v382 = vsel %vm356, %v337, 0
        %v385 = vsel %vm356, %v338, 0
        %v388 = vsel %vm356, %v339, 0
        %v391 = vsel %vm356, %v340, 0
        %v394 = vsel %vm356, %v341, 0
        %v397 = vsel %vm356, %v342, 0
        %v400 = vsel %vm356, %v343, 0
        %v403 = vsel %vm356, %v344, 0
        %405 = vmatprep.subr.mxu0 0.0
        %406 = vmatpush1.msra.mxu0 %v345
        %407 = vmatprep.subr.mxu0 0.0
        %408 = vmatpush1.msra.mxu0 %v346
        %409 = vmatprep.subr.mxu0 0.0
        %410 = vmatpush1.msra.mxu0 %v347
        %411 = vmatprep.subr.mxu0 0.0
        %412 = vmatpush1.msra.mxu0 %v348
        %413 = vmatprep.subr.mxu0 0.0
        %414 = vmatpush1.msra.mxu0 0.0
        %415 = vmatprep.subr.mxu0 0.0
        %416 = vmatpush1.msra.mxu0 0.0
        %417 = vmatprep.subr.mxu0 0.0
        %418 = vmatpush1.msra.mxu0 0.0
        %419 = vmatprep.subr.mxu0 0.0
        %420 = vmatpush1.msra.mxu0 0.0
        %421 = vmatprep.subr.mxu0 0.0
        %422 = vmatpush1.msra.mxu0 0.0
        %423 = vmatprep.subr.mxu0 0.0
        %424 = vmatpush1.msra.mxu0 0.0
        %425 = vmatprep.subr.mxu0 0.0
        %426 = vmatpush1.msra.mxu0 0.0
        %427 = vmatprep.subr.mxu0 0.0
        %428 = vmatpush1.msra.mxu0 0.0
        %429 = vmatprep.subr.mxu0 0.0
        %430 = vmatpush1.msra.mxu0 0.0
        %431 = vmatprep.subr.mxu0 0.0
        %432 = vmatpush1.msra.mxu0 0.0
        %433 = vmatprep.subr.mxu0 0.0
        %434 = vmatpush1.msra.mxu0 0.0
        %435 = vmatprep.subr.mxu0 0.0
        %436 = vmatpush1.msra.mxu0 0.0
        %437 = vmatprep.subr.mxu0 0.0
        %438 = vmatpush1.msra.mxu0 0.0
        %439 = vmatprep.subr.mxu0 0.0
        %440 = vmatpush1.msra.mxu0 0.0
        %441 = vmatprep.subr.mxu0 0.0
        %442 = vmatpush1.msra.mxu0 0.0
        %443 = vmatprep.subr.mxu0 0.0
        %444 = vmatpush1.msra.mxu0 0.0
        %445 = vmatprep.subr.mxu0 0.0
        %446 = vmatpush1.msra.mxu0 0.0
        %447 = vmatprep.subr.mxu0 0.0
        %448 = vmatpush1.msra.mxu0 0.0
        %449 = vmatprep.subr.mxu0 0.0
        %450 = vmatpush1.msra.mxu0 0.0
        %451 = vmatprep.subr.mxu0 0.0
        %452 = vmatpush1.msra.mxu0 0.0
        %453 = vmatprep.subr.mxu0 0.0
        %454 = vmatpush1.msra.mxu0 0.0
        %455 = vmatprep.subr.mxu0 0.0
        %456 = vmatpush1.msra.mxu0 0.0
        %457 = vmatprep.subr.mxu0 0.0
        %458 = vmatpush1.msra.mxu0 0.0
        %459 = vmatprep.subr.mxu0 0.0
        %460 = vmatpush1.msra.mxu0 0.0
        %461 = vmatprep.subr.mxu0 0.0
        %462 = vmatpush1.msra.mxu0 0.0
        %463 = vmatprep.subr.mxu0 0.0
        %464 = vmatpush1.msra.mxu0 0.0
        %465 = vmatprep.subr.mxu0 0.0
        %466 = vmatpush1.msra.mxu0 0.0
        %467 = vmatprep.subr.mxu0 0.0
        %468 = vmatpush1.msra.mxu0 0.0
        %469 = vmatprep.mubr.f32.mxu0 0.0
        %470 = vmatmul.mubr.f32.gmra.mrb[0].mxu0 %v358
        %v471 = vpop.f32.mrb[0].mxu0
        %v472 = vadd.f32 %v354, %v471
        %v473 = vpop.f32.mrb[0].mxu0
        %474 = vmatprep.mubr.f32.mxu0 0.0
        %475 = vmatmul.mubr.f32.gmra.mrb[0].mxu0 %v361
        %v476 = vpop.f32.mrb[0].mxu0
        %v477 = vadd.f32 %v354, %v476
        %v478 = vpop.f32.mrb[0].mxu0
        %479 = vmatprep.mubr.f32.mxu0 0.0
        %480 = vmatmul.mubr.f32.gmra.mrb[0].mxu0 %v364
        %v481 = vpop.f32.mrb[0].mxu0
        %v482 = vadd.f32 %v354, %v481
        %v483 = vpop.f32.mrb[0].mxu0
        %484 = vmatprep.mubr.f32.mxu0 0.0
        %485 = vmatmul.mubr.f32.gmra.mrb[0].mxu0 %v367
        %v486 = vpop.f32.mrb[0].mxu0
        %v487 = vadd.f32 %v354, %v486
        %v488 = vpop.f32.mrb[0].mxu0
        %489 = vmatprep.mubr.f32.mxu0 0.0
        %490 = vmatmul.mubr.f32.gmra.mrb[0].mxu0 %v370
        %v491 = vpop.f32.mrb[0].mxu0
        %v492 = vadd.f32 %v354, %v491
        %v493 = vpop.f32.mrb[0].mxu0
        %494 = vmatprep.mubr.f32.mxu0 0.0
        %495 = vmatmul.mubr.f32.gmra.mrb[0].mxu0 %v373
        %v496 = vpop.f32.mrb[0].mxu0
        %v497 = vadd.f32 %v354, %v496
        %v498 = vpop.f32.mrb[0].mxu0
        %499 = vmatprep.mubr.f32.mxu0 0.0
        %500 = vmatmul.mubr.f32.gmra.mrb[0].mxu0 %v376
        %v501 = vpop.f32.mrb[0].mxu0
        %v502 = vadd.f32 %v354, %v501
        %v503 = vpop.f32.mrb[0].mxu0
        %504 = vmatprep.mubr.f32.mxu0 0.0
        %505 = vmatmul.mubr.f32.gmra.mrb[0].mxu0 %v379
        %v506 = vpop.f32.mrb[0].mxu0
        %v507 = vadd.f32 %v354, %v506
        %v508 = vpop.f32.mrb[0].mxu0
        %509 = vmatprep.mubr.f32.mxu0 0.0
        %510 = vmatmul.mubr.f32.gmra.mrb[0].mxu0 %v382
        %v511 = vpop.f32.mrb[0].mxu0
        %v512 = vadd.f32 %v354, %v511
        %v513 = vpop.f32.mrb[0].mxu0
        %514 = vmatprep.mubr.f32.mxu0 0.0
        %515 = vmatmul.mubr.f32.gmra.mrb[0].mxu0 %v385
        %v516 = vpop.f32.mrb[0].mxu0
        %v517 = vadd.f32 %v354, %v516
        %v518 = vpop.f32.mrb[0].mxu0
        %519 = vmatprep.mubr.f32.mxu0 0.0
        %520 = vmatmul.mubr.f32.gmra.mrb[0].mxu0 %v388
        %v521 = vpop.f32.mrb[0].mxu0
        %v522 = vadd.f32 %v354, %v521
        %v523 = vpop.f32.mrb[0].mxu0
        %524 = vmatprep.mubr.f32.mxu0 0.0
        %525 = vmatmul.mubr.f32.gmra.mrb[0].mxu0 %v391
        %v526 = vpop.f32.mrb[0].mxu0
        %v527 = vadd.f32 %v354, %v526
        %v528 = vpop.f32.mrb[0].mxu0
        %529 = vmatprep.mubr.f32.mxu0 0.0
        %530 = vmatmul.mubr.f32.gmra.mrb[0].mxu0 %v394
        %v531 = vpop.f32.mrb[0].mxu0
        %v532 = vadd.f32 %v354, %v531
        %v533 = vpop.f32.mrb[0].mxu0
        %534 = vmatprep.mubr.f32.mxu0 0.0
        %535 = vmatmul.mubr.f32.gmra.mrb[0].mxu0 %v397
        %v536 = vpop.f32.mrb[0].mxu0
        %v537 = vadd.f32 %v354, %v536
        %v538 = vpop.f32.mrb[0].mxu0
        %539 = vmatprep.mubr.f32.mxu0 0.0
        %540 = vmatmul.mubr.f32.gmra.mrb[0].mxu0 %v400
        %v541 = vpop.f32.mrb[0].mxu0
        %v542 = vadd.f32 %v354, %v541
        %v543 = vpop.f32.mrb[0].mxu0
        %544 = vmatprep.mubr.f32.mxu0 0.0
        %545 = vmatmul.mubr.f32.gmra.mrb[0].mxu0 %v403
        %v546 = vpop.f32.mrb[0].mxu0
        %v547 = vadd.f32 %v354, %v546
        %v548 = vpop.f32.mrb[0].mxu0
        %549 = vdwg.mxu0
        %v550 = vtanh.pop %v472
        %v551 = vtanh.pop %v477
        %v552 = vtanh.pop %v482
        %v553 = vtanh.pop %v487
        %v554 = vtanh.pop %v492
        %v555 = vtanh.pop %v497
        %v556 = vtanh.pop %v502
        %v557 = vtanh.pop %v507
        %v558 = vtanh.pop %v512
        %v559 = vtanh.pop %v517
        %v560 = vtanh.pop %v522
        %v561 = vtanh.pop %v527
        %v562 = vtanh.pop %v532
        %v563 = vtanh.pop %v537
        %v564 = vtanh.pop %v542
        %v565 = vtanh.pop %v547
        %v566 = vld [vmem:[%s4] sm:$0x1]
        %v568 = vlaneseq
        %v569 = vshrl.u32 %v568, 7
        %v570 = vsub.s32 0, %v569
        %v571 = vrot.slane %v566, %v570
        %v573 = vmul.f32 %v550, %v571
        %v574 = vmul.f32 %v551, %v571
        %v575 = vmul.f32 %v552, %v571
        %v576 = vmul.f32 %v553, %v571
        %v577 = vmul.f32 %v554, %v571
        %v578 = vmul.f32 %v555, %v571
        %v579 = vmul.f32 %v556, %v571
        %v580 = vmul.f32 %v557, %v571
        %v581 = vmul.f32 %v558, %v571
        %v582 = vmul.f32 %v559, %v571
        %v583 = vmul.f32 %v560, %v571
        %v584 = vmul.f32 %v561, %v571
        %v585 = vmul.f32 %v562, %v571
        %v586 = vmul.f32 %v563, %v571
        %v587 = vmul.f32 %v564, %v571
        %v588 = vmul.f32 %v565, %v571
        %vm589 = vcmask 130048
        %v590 = vsel %vm589, %v573, 0.0
        %591 = vadd.xlane.f32.xlu0 %v590
        %v592 = vpop.xlane.xlu0 %591
        %v593 = vsel %vm589, %v574, 0.0
        %594 = vadd.xlane.f32.xlu0 %v593
        %v595 = vpop.xlane.xlu0 %594
        %v596 = vsel %vm589, %v575, 0.0
        %597 = vadd.xlane.f32.xlu0 %v596
        %v598 = vpop.xlane.xlu0 %597
        %v599 = vsel %vm589, %v576, 0.0
        %600 = vadd.xlane.f32.xlu0 %v599
        %v601 = vpop.xlane.xlu0 %600
        %v602 = vsel %vm589, %v577, 0.0
        %603 = vadd.xlane.f32.xlu0 %v602
        %v604 = vpop.xlane.xlu0 %603
        %v605 = vsel %vm589, %v578, 0.0
        %606 = vadd.xlane.f32.xlu0 %v605
        %v607 = vpop.xlane.xlu0 %606
        %v608 = vsel %vm589, %v579, 0.0
        %609 = vadd.xlane.f32.xlu0 %v608
        %v610 = vpop.xlane.xlu0 %609
        %v611 = vsel %vm589, %v580, 0.0
        %612 = vadd.xlane.f32.xlu0 %v611
        %v613 = vpop.xlane.xlu0 %612
        %v614 = vsel %vm589, %v581, 0.0
        %615 = vadd.xlane.f32.xlu0 %v614
        %v616 = vpop.xlane.xlu0 %615
        %v617 = vsel %vm589, %v582, 0.0
        %618 = vadd.xlane.f32.xlu0 %v617
        %v619 = vpop.xlane.xlu0 %618
        %v620 = vsel %vm589, %v583, 0.0
        %621 = vadd.xlane.f32.xlu0 %v620
        %v622 = vpop.xlane.xlu0 %621
        %v623 = vsel %vm589, %v584, 0.0
        %624 = vadd.xlane.f32.xlu0 %v623
        %v625 = vpop.xlane.xlu0 %624
        %v626 = vsel %vm589, %v585, 0.0
        %627 = vadd.xlane.f32.xlu0 %v626
        %v628 = vpop.xlane.xlu0 %627
        %v629 = vsel %vm589, %v586, 0.0
        %630 = vadd.xlane.f32.xlu0 %v629
        %v631 = vpop.xlane.xlu0 %630
        %v632 = vsel %vm589, %v587, 0.0
        %633 = vadd.xlane.f32.xlu0 %v632
        %v634 = vpop.xlane.xlu0 %633
        %v635 = vsel %vm589, %v588, 0.0
        %636 = vadd.xlane.f32.xlu0 %v635
        %v637 = vpop.xlane.xlu0 %636
        %v638 = vld [vmem:[#allocation2] sm:$0x1]
        %s639 = vtos %v638
        %v640 = vstv %s639
        %v641 = vadd.f32 %v592, %v640
        %v642 = vadd.f32 %v595, %v640
        %v643 = vadd.f32 %v598, %v640
        %v644 = vadd.f32 %v601, %v640
        %v645 = vadd.f32 %v604, %v640
        %v646 = vadd.f32 %v607, %v640
        %v647 = vadd.f32 %v610, %v640
        %v648 = vadd.f32 %v613, %v640
        %v649 = vadd.f32 %v616, %v640
        %v650 = vadd.f32 %v619, %v640
        %v651 = vadd.f32 %v622, %v640
        %v652 = vadd.f32 %v625, %v640
        %v653 = vadd.f32 %v628, %v640
        %v654 = vadd.f32 %v631, %v640
        %v655 = vadd.f32 %v634, %v640
        %v656 = vadd.f32 %v637, %v640
        %v657 = vlaneseq
        %v658 = vand.u32 %v657, 127
        %v659 = vld [vmem:[%s324] sm:$0xff]
        %660 = vset.pattern.permute.xlu0 0
        %661 = vperm.xlu0 %660, %v659
        %v662 = vpop.permute.xlu0 %661
        %vm663 = vcmp.lt.s32.totalorder %v658, %v662
        %v664 = vsel %vm663, 1, 0
        %v665 = vcvt.s32.f32 %v664
        %v667 = vlaneseq
        %v668 = vshrl.u32 %v667, 7
        %v669 = vsub.s32 0, %v668
        %v670 = vrot.slane %v665, %v669
        %672 = vbcast.lane.b32.xlu0 %v670, 256
        %v673 = vpop.permute.xlu0 %672
        %s675 = sor.u32 256, 8
        %676 = vbcast.lane.b32.xlu0 %v670, %s675
        %v677 = vpop.permute.xlu0 %676
        %v678 = vlaneseq
        %v679 = vshrl.u32 %v678, 7
        %v680 = vsub.s32 1, %v679
        %v681 = vrot.slane %v665, %v680
        %683 = vbcast.lane.b32.xlu0 %v681, 256
        %v684 = vpop.permute.xlu0 %683
        %s686 = sor.u32 256, 8
        %687 = vbcast.lane.b32.xlu0 %v681, %s686
        %v688 = vpop.permute.xlu0 %687
        %v689 = vlaneseq
        %v690 = vshrl.u32 %v689, 7
        %v691 = vsub.s32 2, %v690
        %v692 = vrot.slane %v665, %v691
        %694 = vbcast.lane.b32.xlu0 %v692, 256
        %v695 = vpop.permute.xlu0 %694
        %s697 = sor.u32 256, 8
        %698 = vbcast.lane.b32.xlu0 %v692, %s697
        %v699 = vpop.permute.xlu0 %698
        %v700 = vlaneseq
        %v701 = vshrl.u32 %v700, 7
        %v702 = vsub.s32 3, %v701
        %v703 = vrot.slane %v665, %v702
        %705 = vbcast.lane.b32.xlu0 %v703, 256
        %v706 = vpop.permute.xlu0 %705
        %s708 = sor.u32 256, 8
        %709 = vbcast.lane.b32.xlu0 %v703, %s708
        %v710 = vpop.permute.xlu0 %709
        %v711 = vlaneseq
        %v712 = vshrl.u32 %v711, 7
        %v713 = vsub.s32 4, %v712
        %v714 = vrot.slane %v665, %v713
        %716 = vbcast.lane.b32.xlu0 %v714, 256
        %v717 = vpop.permute.xlu0 %716
        %s719 = sor.u32 256, 8
        %720 = vbcast.lane.b32.xlu0 %v714, %s719
        %v721 = vpop.permute.xlu0 %720
        %v722 = vlaneseq
        %v723 = vshrl.u32 %v722, 7
        %v724 = vsub.s32 5, %v723
        %v725 = vrot.slane %v665, %v724
        %727 = vbcast.lane.b32.xlu0 %v725, 256
        %v728 = vpop.permute.xlu0 %727
        %s730 = sor.u32 256, 8
        %731 = vbcast.lane.b32.xlu0 %v725, %s730
        %v732 = vpop.permute.xlu0 %731
        %v733 = vlaneseq
        %v734 = vshrl.u32 %v733, 7
        %v735 = vsub.s32 6, %v734
        %v736 = vrot.slane %v665, %v735
        %738 = vbcast.lane.b32.xlu0 %v736, 256
        %v739 = vpop.permute.xlu0 %738
        %s741 = sor.u32 256, 8
        %742 = vbcast.lane.b32.xlu0 %v736, %s741
        %v743 = vpop.permute.xlu0 %742
        %v744 = vlaneseq
        %v745 = vshrl.u32 %v744, 7
        %v746 = vsub.s32 7, %v745
        %v747 = vrot.slane %v665, %v746
        %749 = vbcast.lane.b32.xlu0 %v747, 256
        %v750 = vpop.permute.xlu0 %749
        %s752 = sor.u32 256, 8
        %753 = vbcast.lane.b32.xlu0 %v747, %s752
        %v754 = vpop.permute.xlu0 %753
        %v771 = vadd.f32 %v641, %v673
        %v772 = vadd.f32 %v642, %v677
        %v773 = vadd.f32 %v643, %v684
        %v774 = vadd.f32 %v644, %v688
        %v775 = vadd.f32 %v645, %v695
        %v776 = vadd.f32 %v646, %v699
        %v777 = vadd.f32 %v647, %v706
        %v778 = vadd.f32 %v648, %v710
        %v779 = vadd.f32 %v649, %v717
        %v780 = vadd.f32 %v650, %v721
        %v781 = vadd.f32 %v651, %v728
        %v782 = vadd.f32 %v652, %v732
        %v783 = vadd.f32 %v653, %v739
        %v784 = vadd.f32 %v654, %v743
        %v785 = vadd.f32 %v655, %v750
        %v786 = vadd.f32 %v656, %v754
        %803 = vset.pattern.permute.xlu0 0
        %804 = vperm.xlu0 %803, %v771
        %v805 = vpop.permute.xlu0 %804
        %806 = vset.pattern.permute.xlu0 0
        %807 = vperm.xlu0 %806, %v772
        %v808 = vpop.permute.xlu0 %807
        %809 = vset.pattern.permute.xlu0 0
        %810 = vperm.xlu0 %809, %v773
        %v811 = vpop.permute.xlu0 %810
        %812 = vset.pattern.permute.xlu0 0
        %813 = vperm.xlu0 %812, %v774
        %v814 = vpop.permute.xlu0 %813
        %815 = vset.pattern.permute.xlu0 0
        %816 = vperm.xlu0 %815, %v775
        %v817 = vpop.permute.xlu0 %816
        %818 = vset.pattern.permute.xlu0 0
        %819 = vperm.xlu0 %818, %v776
        %v820 = vpop.permute.xlu0 %819
        %821 = vset.pattern.permute.xlu0 0
        %822 = vperm.xlu0 %821, %v777
        %v823 = vpop.permute.xlu0 %822
        %824 = vset.pattern.permute.xlu0 0
        %825 = vperm.xlu0 %824, %v778
        %v826 = vpop.permute.xlu0 %825
        %827 = vset.pattern.permute.xlu0 0
        %828 = vperm.xlu0 %827, %v779
        %v829 = vpop.permute.xlu0 %828
        %830 = vset.pattern.permute.xlu0 0
        %831 = vperm.xlu0 %830, %v780
        %v832 = vpop.permute.xlu0 %831
        %833 = vset.pattern.permute.xlu0 0
        %834 = vperm.xlu0 %833, %v781
        %v835 = vpop.permute.xlu0 %834
        %836 = vset.pattern.permute.xlu0 0
        %837 = vperm.xlu0 %836, %v782
        %v838 = vpop.permute.xlu0 %837
        %839 = vset.pattern.permute.xlu0 0
        %840 = vperm.xlu0 %839, %v783
        %v841 = vpop.permute.xlu0 %840
        %842 = vset.pattern.permute.xlu0 0
        %843 = vperm.xlu0 %842, %v784
        %v844 = vpop.permute.xlu0 %843
        %845 = vset.pattern.permute.xlu0 0
        %846 = vperm.xlu0 %845, %v785
        %v847 = vpop.permute.xlu0 %846
        %848 = vset.pattern.permute.xlu0 0
        %849 = vperm.xlu0 %848, %v786
        %v850 = vpop.permute.xlu0 %849
        %v851 = vlaneseq
        %v852 = vshrl.u32 %v851, 7
        %v853 = vsub.s32 %v658, %v852
        %v854 = vrot.slane %v805, %v853
        %v855 = vadd.s32 %v658, 4294967288
        %v856 = vlaneseq
        %v857 = vshrl.u32 %v856, 7
        %v858 = vsub.s32 %v855, %v857
        %v859 = vrot.slane %v808, %v858
        %vm860 = vcmask 130112
        %v861 = vsel %vm860, %v859, %v854
        %v862 = vlaneseq
        %v863 = vshrl.u32 %v862, 7
        %v864 = vsub.s32 %v658, %v863
        %v865 = vrot.slane %v811, %v864
        %v866 = vlaneseq
        %v867 = vshrl.u32 %v866, 7
        %v868 = vsub.s32 %v855, %v867
        %v869 = vrot.slane %v814, %v868
        %v870 = vsel %vm860, %v869, %v865
        %v871 = vlaneseq
        %v872 = vshrl.u32 %v871, 7
        %v873 = vsub.s32 %v658, %v872
        %v874 = vrot.slane %v817, %v873
        %v875 = vlaneseq
        %v876 = vshrl.u32 %v875, 7
        %v877 = vsub.s32 %v855, %v876
        %v878 = vrot.slane %v820, %v877
        %v879 = vsel %vm860, %v878, %v874
        %v880 = vlaneseq
        %v881 = vshrl.u32 %v880, 7
        %v882 = vsub.s32 %v658, %v881
        %v883 = vrot.slane %v823, %v882
        %v884 = vlaneseq
        %v885 = vshrl.u32 %v884, 7
        %v886 = vsub.s32 %v855, %v885
        %v887 = vrot.slane %v826, %v886
        %v888 = vsel %vm860, %v887, %v883
        %v889 = vlaneseq
        %v890 = vshrl.u32 %v889, 7
        %v891 = vsub.s32 %v658, %v890
        %v892 = vrot.slane %v829, %v891
        %v893 = vlaneseq
        %v894 = vshrl.u32 %v893, 7
        %v895 = vsub.s32 %v855, %v894
        %v896 = vrot.slane %v832, %v895
        %v897 = vsel %vm860, %v896, %v892
        %v898 = vlaneseq
        %v899 = vshrl.u32 %v898, 7
        %v900 = vsub.s32 %v658, %v899
        %v901 = vrot.slane %v835, %v900
        %v902 = vlaneseq
        %v903 = vshrl.u32 %v902, 7
        %v904 = vsub.s32 %v855, %v903
        %v905 = vrot.slane %v838, %v904
        %v906 = vsel %vm860, %v905, %v901
        %v907 = vlaneseq
        %v908 = vshrl.u32 %v907, 7
        %v909 = vsub.s32 %v658, %v908
        %v910 = vrot.slane %v841, %v909
        %v911 = vlaneseq
        %v912 = vshrl.u32 %v911, 7
        %v913 = vsub.s32 %v855, %v912
        %v914 = vrot.slane %v844, %v913
        %v915 = vsel %vm860, %v914, %v910
        %v916 = vlaneseq
        %v917 = vshrl.u32 %v916, 7
        %v918 = vsub.s32 %v658, %v917
        %v919 = vrot.slane %v847, %v918
        %v920 = vlaneseq
        %v921 = vshrl.u32 %v920, 7
        %v922 = vsub.s32 %v855, %v921
        %v923 = vrot.slane %v850, %v922
        %v924 = vsel %vm860, %v923, %v919
        %vm925 = vcmask 1041409
        %v926 = vsel %vm925, %v870, %v861
        %vm927 = vcmask 1042434
        %v928 = vsel %vm927, %v879, %v926
        %vm929 = vcmask 1043459
        %v930 = vsel %vm929, %v888, %v928
        %vm931 = vcmask 1044484
        %v932 = vsel %vm931, %v897, %v930
        %vm933 = vcmask 1045509
        %v934 = vsel %vm933, %v906, %v932
        %vm935 = vcmask 1046534
        %v936 = vsel %vm935, %v915, %v934
        %vm937 = vcmask 1047559
        %v938 = vsel %vm937, %v924, %v936
        %v940 = vsel %vm589, %v938, -inf
        %941 = vmax.xlane.f32.xlu0 %v940
        %v942 = vpop.xlane.xlu0 %941
        %v944 = vlaneseq
        %v945 = vshrl.u32 %v944, 7
        %v946 = vsub.s32 0, %v945
        %v947 = vrot.slane %v942, %v946
        %v948 = vlaneseq
        %v949 = vshrl.u32 %v948, 7
        %v950 = vsub.s32 1, %v949
        %v951 = vrot.slane %v942, %v950
        %v952 = vlaneseq
        %v953 = vshrl.u32 %v952, 7
        %v954 = vsub.s32 2, %v953
        %v955 = vrot.slane %v942, %v954
        %v956 = vlaneseq
        %v957 = vshrl.u32 %v956, 7
        %v958 = vsub.s32 3, %v957
        %v959 = vrot.slane %v942, %v958
        %v960 = vlaneseq
        %v961 = vshrl.u32 %v960, 7
        %v962 = vsub.s32 4, %v961
        %v963 = vrot.slane %v942, %v962
        %v964 = vlaneseq
        %v965 = vshrl.u32 %v964, 7
        %v966 = vsub.s32 5, %v965
        %v967 = vrot.slane %v942, %v966
        %v968 = vlaneseq
        %v969 = vshrl.u32 %v968, 7
        %v970 = vsub.s32 6, %v969
        %v971 = vrot.slane %v942, %v970
        %v972 = vlaneseq
        %v973 = vshrl.u32 %v972, 7
        %v974 = vsub.s32 7, %v973
        %v975 = vrot.slane %v942, %v974
        %v984 = vsub.f32 %v771, %v947
        %v985 = vsub.f32 %v772, %v947
        %v986 = vsub.f32 %v773, %v951
        %v987 = vsub.f32 %v774, %v951
        %v988 = vsub.f32 %v775, %v955
        %v989 = vsub.f32 %v776, %v955
        %v990 = vsub.f32 %v777, %v959
        %v991 = vsub.f32 %v778, %v959
        %v992 = vsub.f32 %v779, %v963
        %v993 = vsub.f32 %v780, %v963
        %v994 = vsub.f32 %v781, %v967
        %v995 = vsub.f32 %v782, %v967
        %v996 = vsub.f32 %v783, %v971
        %v997 = vsub.f32 %v784, %v971
        %v998 = vsub.f32 %v785, %v975
        %v999 = vsub.f32 %v786, %v975
        %v1000 = vmul.f32 %v984, 1.442695
        %v1001 = vpow.pop %v1000
        %v1002 = vmul.f32 %v985, 1.442695
        %v1003 = vpow.pop %v1002
        %v1004 = vmul.f32 %v986, 1.442695
        %v1005 = vpow.pop %v1004
        %v1006 = vmul.f32 %v987, 1.442695
        %v1007 = vpow.pop %v1006
        %v1008 = vmul.f32 %v988, 1.442695
        %v1009 = vpow.pop %v1008
        %v1010 = vmul.f32 %v989, 1.442695
        %v1011 = vpow.pop %v1010
        %v1012 = vmul.f32 %v990, 1.442695
        %v1013 = vpow.pop %v1012
        %v1014 = vmul.f32 %v991, 1.442695
        %v1015 = vpow.pop %v1014
        %v1016 = vmul.f32 %v992, 1.442695
        %v1017 = vpow.pop %v1016
        %v1018 = vmul.f32 %v993, 1.442695
        %v1019 = vpow.pop %v1018
        %v1020 = vmul.f32 %v994, 1.442695
        %v1021 = vpow.pop %v1020
        %v1022 = vmul.f32 %v995, 1.442695
        %v1023 = vpow.pop %v1022
        %v1024 = vmul.f32 %v996, 1.442695
        %v1025 = vpow.pop %v1024
        %v1026 = vmul.f32 %v997, 1.442695
        %v1027 = vpow.pop %v1026
        %v1028 = vmul.f32 %v998, 1.442695
        %v1029 = vpow.pop %v1028
        %v1030 = vmul.f32 %v999, 1.442695
        %v1031 = vpow.pop %v1030
        %1048 = vset.pattern.permute.xlu0 0
        %1049 = vperm.xlu0 %1048, %v1001
        %v1050 = vpop.permute.xlu0 %1049
        %1051 = vset.pattern.permute.xlu0 0
        %1052 = vperm.xlu0 %1051, %v1003
        %v1053 = vpop.permute.xlu0 %1052
        %1054 = vset.pattern.permute.xlu0 0
        %1055 = vperm.xlu0 %1054, %v1005
        %v1056 = vpop.permute.xlu0 %1055
        %1057 = vset.pattern.permute.xlu0 0
        %1058 = vperm.xlu0 %1057, %v1007
        %v1059 = vpop.permute.xlu0 %1058
        %1060 = vset.pattern.permute.xlu0 0
        %1061 = vperm.xlu0 %1060, %v1009
        %v1062 = vpop.permute.xlu0 %1061
        %1063 = vset.pattern.permute.xlu0 0
        %1064 = vperm.xlu0 %1063, %v1011
        %v1065 = vpop.permute.xlu0 %1064
        %1066 = vset.pattern.permute.xlu0 0
        %1067 = vperm.xlu0 %1066, %v1013
        %v1068 = vpop.permute.xlu0 %1067
        %1069 = vset.pattern.permute.xlu0 0
        %1070 = vperm.xlu0 %1069, %v1015
        %v1071 = vpop.permute.xlu0 %1070
        %1072 = vset.pattern.permute.xlu0 0
        %1073 = vperm.xlu0 %1072, %v1017
        %v1074 = vpop.permute.xlu0 %1073
        %1075 = vset.pattern.permute.xlu0 0
        %1076 = vperm.xlu0 %1075, %v1019
        %v1077 = vpop.permute.xlu0 %1076
        %1078 = vset.pattern.permute.xlu0 0
        %1079 = vperm.xlu0 %1078, %v1021
        %v1080 = vpop.permute.xlu0 %1079
        %1081 = vset.pattern.permute.xlu0 0
        %1082 = vperm.xlu0 %1081, %v1023
        %v1083 = vpop.permute.xlu0 %1082
        %1084 = vset.pattern.permute.xlu0 0
        %1085 = vperm.xlu0 %1084, %v1025
        %v1086 = vpop.permute.xlu0 %1085
        %1087 = vset.pattern.permute.xlu0 0
        %1088 = vperm.xlu0 %1087, %v1027
        %v1089 = vpop.permute.xlu0 %1088
        %1090 = vset.pattern.permute.xlu0 0
        %1091 = vperm.xlu0 %1090, %v1029
        %v1092 = vpop.permute.xlu0 %1091
        %1093 = vset.pattern.permute.xlu0 0
        %1094 = vperm.xlu0 %1093, %v1031
        %v1095 = vpop.permute.xlu0 %1094
        %v1096 = vlaneseq
        %v1097 = vshrl.u32 %v1096, 7
        %v1098 = vsub.s32 %v658, %v1097
        %v1099 = vrot.slane %v1050, %v1098
        %v1100 = vlaneseq
        %v1101 = vshrl.u32 %v1100, 7
        %v1102 = vsub.s32 %v855, %v1101
        %v1103 = vrot.slane %v1053, %v1102
        %v1104 = vsel %vm860, %v1103, %v1099
        %v1105 = vlaneseq
        %v1106 = vshrl.u32 %v1105, 7
        %v1107 = vsub.s32 %v658, %v1106
        %v1108 = vrot.slane %v1056, %v1107
        %v1109 = vlaneseq
        %v1110 = vshrl.u32 %v1109, 7
        %v1111 = vsub.s32 %v855, %v1110
        %v1112 = vrot.slane %v1059, %v1111
        %v1113 = vsel %vm860, %v1112, %v1108
        %v1114 = vlaneseq
        %v1115 = vshrl.u32 %v1114, 7
        %v1116 = vsub.s32 %v658, %v1115
        %v1117 = vrot.slane %v1062, %v1116
        %v1118 = vlaneseq
        %v1119 = vshrl.u32 %v1118, 7
        %v1120 = vsub.s32 %v855, %v1119
        %v1121 = vrot.slane %v1065, %v1120
        %v1122 = vsel %vm860, %v1121, %v1117
        %v1123 = vlaneseq
        %v1124 = vshrl.u32 %v1123, 7
        %v1125 = vsub.s32 %v658, %v1124
        %v1126 = vrot.slane %v1068, %v1125
        %v1127 = vlaneseq
        %v1128 = vshrl.u32 %v1127, 7
        %v1129 = vsub.s32 %v855, %v1128
        %v1130 = vrot.slane %v1071, %v1129
        %v1131 = vsel %vm860, %v1130, %v1126
        %v1132 = vlaneseq
        %v1133 = vshrl.u32 %v1132, 7
        %v1134 = vsub.s32 %v658, %v1133
        %v1135 = vrot.slane %v1074, %v1134
        %v1136 = vlaneseq
        %v1137 = vshrl.u32 %v1136, 7
        %v1138 = vsub.s32 %v855, %v1137
        %v1139 = vrot.slane %v1077, %v1138
        %v1140 = vsel %vm860, %v1139, %v1135
        %v1141 = vlaneseq
        %v1142 = vshrl.u32 %v1141, 7
        %v1143 = vsub.s32 %v658, %v1142
        %v1144 = vrot.slane %v1080, %v1143
        %v1145 = vlaneseq
        %v1146 = vshrl.u32 %v1145, 7
        %v1147 = vsub.s32 %v855, %v1146
        %v1148 = vrot.slane %v1083, %v1147
        %v1149 = vsel %vm860, %v1148, %v1144
        %v1150 = vlaneseq
        %v1151 = vshrl.u32 %v1150, 7
        %v1152 = vsub.s32 %v658, %v1151
        %v1153 = vrot.slane %v1086, %v1152
        %v1154 = vlaneseq
        %v1155 = vshrl.u32 %v1154, 7
        %v1156 = vsub.s32 %v855, %v1155
        %v1157 = vrot.slane %v1089, %v1156
        %v1158 = vsel %vm860, %v1157, %v1153
        %v1159 = vlaneseq
        %v1160 = vshrl.u32 %v1159, 7
        %v1161 = vsub.s32 %v658, %v1160
        %v1162 = vrot.slane %v1092, %v1161
        %v1163 = vlaneseq
        %v1164 = vshrl.u32 %v1163, 7
        %v1165 = vsub.s32 %v855, %v1164
        %v1166 = vrot.slane %v1095, %v1165
        %v1167 = vsel %vm860, %v1166, %v1162
        %v1168 = vsel %vm925, %v1113, %v1104
        %v1169 = vsel %vm927, %v1122, %v1168
        %v1170 = vsel %vm929, %v1131, %v1169
        %v1171 = vsel %vm931, %v1140, %v1170
        %v1172 = vsel %vm933, %v1149, %v1171
        %v1173 = vsel %vm935, %v1158, %v1172
        %v1174 = vsel %vm937, %v1167, %v1173
        %v1176 = vsel %vm589, %v1174, 0.0
        %1177 = vadd.xlane.f32.xlu0 %v1176
        %v1178 = vpop.xlane.xlu0 %1177
        %v1179 = vrcp.pop %v1178
        %v1180 = vmul.f32 %v1178, %v1179
        %v1181 = vsub.f32 2.0, %v1180
        %v1182 = vmul.f32 %v1179, %v1181
        %v1184 = vlaneseq
        %v1185 = vshrl.u32 %v1184, 7
        %v1186 = vsub.s32 0, %v1185
        %v1187 = vrot.slane %v1182, %v1186
        %v1188 = vlaneseq
        %v1189 = vshrl.u32 %v1188, 7
        %v1190 = vsub.s32 1, %v1189
        %v1191 = vrot.slane %v1182, %v1190
        %v1192 = vlaneseq
        %v1193 = vshrl.u32 %v1192, 7
        %v1194 = vsub.s32 2, %v1193
        %v1195 = vrot.slane %v1182, %v1194
        %v1196 = vlaneseq
        %v1197 = vshrl.u32 %v1196, 7
        %v1198 = vsub.s32 3, %v1197
        %v1199 = vrot.slane %v1182, %v1198
        %v1200 = vlaneseq
        %v1201 = vshrl.u32 %v1200, 7
        %v1202 = vsub.s32 4, %v1201
        %v1203 = vrot.slane %v1182, %v1202
        %v1204 = vlaneseq
        %v1205 = vshrl.u32 %v1204, 7
        %v1206 = vsub.s32 5, %v1205
        %v1207 = vrot.slane %v1182, %v1206
        %v1208 = vlaneseq
        %v1209 = vshrl.u32 %v1208, 7
        %v1210 = vsub.s32 6, %v1209
        %v1211 = vrot.slane %v1182, %v1210
        %v1212 = vlaneseq
        %v1213 = vshrl.u32 %v1212, 7
        %v1214 = vsub.s32 7, %v1213
        %v1215 = vrot.slane %v1182, %v1214
        %v1224 = vmul.f32 %v1001, %v1187
        %v1225 = vmul.f32 %v1003, %v1187
        %v1226 = vmul.f32 %v1005, %v1191
        %v1227 = vmul.f32 %v1007, %v1191
        %v1228 = vmul.f32 %v1009, %v1195
        %v1229 = vmul.f32 %v1011, %v1195
        %v1230 = vmul.f32 %v1013, %v1199
        %v1231 = vmul.f32 %v1015, %v1199
        %v1232 = vmul.f32 %v1017, %v1203
        %v1233 = vmul.f32 %v1019, %v1203
        %v1234 = vmul.f32 %v1021, %v1207
        %v1235 = vmul.f32 %v1023, %v1207
        %v1236 = vmul.f32 %v1025, %v1211
        %v1237 = vmul.f32 %v1027, %v1211
        %v1238 = vmul.f32 %v1029, %v1215
        %v1239 = vmul.f32 %v1031, %v1215
        %v1240 = vmul.f32 %v1224, %v771
        %v1241 = vmul.f32 %v1225, %v772
        %v1242 = vmul.f32 %v1226, %v773
        %v1243 = vmul.f32 %v1227, %v774
        %v1244 = vmul.f32 %v1228, %v775
        %v1245 = vmul.f32 %v1229, %v776
        %v1246 = vmul.f32 %v1230, %v777
        %v1247 = vmul.f32 %v1231, %v778
        %v1248 = vmul.f32 %v1232, %v779
        %v1249 = vmul.f32 %v1233, %v780
        %v1250 = vmul.f32 %v1234, %v781
        %v1251 = vmul.f32 %v1235, %v782
        %v1252 = vmul.f32 %v1236, %v783
        %v1253 = vmul.f32 %v1237, %v784
        %v1254 = vmul.f32 %v1238, %v785
        %v1255 = vmul.f32 %v1239, %v786
        %1272 = vset.pattern.permute.xlu0 0
        %1273 = vperm.xlu0 %1272, %v1240
        %v1274 = vpop.permute.xlu0 %1273
        %1275 = vset.pattern.permute.xlu0 0
        %1276 = vperm.xlu0 %1275, %v1241
        %v1277 = vpop.permute.xlu0 %1276
        %1278 = vset.pattern.permute.xlu0 0
        %1279 = vperm.xlu0 %1278, %v1242
        %v1280 = vpop.permute.xlu0 %1279
        %1281 = vset.pattern.permute.xlu0 0
        %1282 = vperm.xlu0 %1281, %v1243
        %v1283 = vpop.permute.xlu0 %1282
        %1284 = vset.pattern.permute.xlu0 0
        %1285 = vperm.xlu0 %1284, %v1244
        %v1286 = vpop.permute.xlu0 %1285
        %1287 = vset.pattern.permute.xlu0 0
        %1288 = vperm.xlu0 %1287, %v1245
        %v1289 = vpop.permute.xlu0 %1288
        %1290 = vset.pattern.permute.xlu0 0
        %1291 = vperm.xlu0 %1290, %v1246
        %v1292 = vpop.permute.xlu0 %1291
        %1293 = vset.pattern.permute.xlu0 0
        %1294 = vperm.xlu0 %1293, %v1247
        %v1295 = vpop.permute.xlu0 %1294
        %1296 = vset.pattern.permute.xlu0 0
        %1297 = vperm.xlu0 %1296, %v1248
        %v1298 = vpop.permute.xlu0 %1297
        %1299 = vset.pattern.permute.xlu0 0
        %1300 = vperm.xlu0 %1299, %v1249
        %v1301 = vpop.permute.xlu0 %1300
        %1302 = vset.pattern.permute.xlu0 0
        %1303 = vperm.xlu0 %1302, %v1250
        %v1304 = vpop.permute.xlu0 %1303
        %1305 = vset.pattern.permute.xlu0 0
        %1306 = vperm.xlu0 %1305, %v1251
        %v1307 = vpop.permute.xlu0 %1306
        %1308 = vset.pattern.permute.xlu0 0
        %1309 = vperm.xlu0 %1308, %v1252
        %v1310 = vpop.permute.xlu0 %1309
        %1311 = vset.pattern.permute.xlu0 0
        %1312 = vperm.xlu0 %1311, %v1253
        %v1313 = vpop.permute.xlu0 %1312
        %1314 = vset.pattern.permute.xlu0 0
        %1315 = vperm.xlu0 %1314, %v1254
        %v1316 = vpop.permute.xlu0 %1315
        %1317 = vset.pattern.permute.xlu0 0
        %1318 = vperm.xlu0 %1317, %v1255
        %v1319 = vpop.permute.xlu0 %1318
        %v1320 = vlaneseq
        %v1321 = vshrl.u32 %v1320, 7
        %v1322 = vsub.s32 %v658, %v1321
        %v1323 = vrot.slane %v1274, %v1322
        %v1324 = vlaneseq
        %v1325 = vshrl.u32 %v1324, 7
        %v1326 = vsub.s32 %v855, %v1325
        %v1327 = vrot.slane %v1277, %v1326
        %v1328 = vsel %vm860, %v1327, %v1323
        %v1329 = vlaneseq
        %v1330 = vshrl.u32 %v1329, 7
        %v1331 = vsub.s32 %v658, %v1330
        %v1332 = vrot.slane %v1280, %v1331
        %v1333 = vlaneseq
        %v1334 = vshrl.u32 %v1333, 7
        %v1335 = vsub.s32 %v855, %v1334
        %v1336 = vrot.slane %v1283, %v1335
        %v1337 = vsel %vm860, %v1336, %v1332
        %v1338 = vlaneseq
        %v1339 = vshrl.u32 %v1338, 7
        %v1340 = vsub.s32 %v658, %v1339
        %v1341 = vrot.slane %v1286, %v1340
        %v1342 = vlaneseq
        %v1343 = vshrl.u32 %v1342, 7
        %v1344 = vsub.s32 %v855, %v1343
        %v1345 = vrot.slane %v1289, %v1344
        %v1346 = vsel %vm860, %v1345, %v1341
        %v1347 = vlaneseq
        %v1348 = vshrl.u32 %v1347, 7
        %v1349 = vsub.s32 %v658, %v1348
        %v1350 = vrot.slane %v1292, %v1349
        %v1351 = vlaneseq
        %v1352 = vshrl.u32 %v1351, 7
        %v1353 = vsub.s32 %v855, %v1352
        %v1354 = vrot.slane %v1295, %v1353
        %v1355 = vsel %vm860, %v1354, %v1350
        %v1356 = vlaneseq
        %v1357 = vshrl.u32 %v1356, 7
        %v1358 = vsub.s32 %v658, %v1357
        %v1359 = vrot.slane %v1298, %v1358
        %v1360 = vlaneseq
        %v1361 = vshrl.u32 %v1360, 7
        %v1362 = vsub.s32 %v855, %v1361
        %v1363 = vrot.slane %v1301, %v1362
        %v1364 = vsel %vm860, %v1363, %v1359
        %v1365 = vlaneseq
        %v1366 = vshrl.u32 %v1365, 7
        %v1367 = vsub.s32 %v658, %v1366
        %v1368 = vrot.slane %v1304, %v1367
        %v1369 = vlaneseq
        %v1370 = vshrl.u32 %v1369, 7
        %v1371 = vsub.s32 %v855, %v1370
        %v1372 = vrot.slane %v1307, %v1371
        %v1373 = vsel %vm860, %v1372, %v1368
        %v1374 = vlaneseq
        %v1375 = vshrl.u32 %v1374, 7
        %v1376 = vsub.s32 %v658, %v1375
        %v1377 = vrot.slane %v1310, %v1376
        %v1378 = vlaneseq
        %v1379 = vshrl.u32 %v1378, 7
        %v1380 = vsub.s32 %v855, %v1379
        %v1381 = vrot.slane %v1313, %v1380
        %v1382 = vsel %vm860, %v1381, %v1377
        %v1383 = vlaneseq
        %v1384 = vshrl.u32 %v1383, 7
        %v1385 = vsub.s32 %v658, %v1384
        %v1386 = vrot.slane %v1316, %v1385
        %v1387 = vlaneseq
        %v1388 = vshrl.u32 %v1387, 7
        %v1389 = vsub.s32 %v855, %v1388
        %v1390 = vrot.slane %v1319, %v1389
        %v1391 = vsel %vm860, %v1390, %v1386
        %v1392 = vsel %vm925, %v1337, %v1328
        %v1393 = vsel %vm927, %v1346, %v1392
        %v1394 = vsel %vm929, %v1355, %v1393
        %v1395 = vsel %vm931, %v1364, %v1394
        %v1396 = vsel %vm933, %v1373, %v1395
        %v1397 = vsel %vm935, %v1382, %v1396
        %v1398 = vsel %vm937, %v1391, %v1397
        %v1400 = vsel %vm589, %v1398, 0.0
        %1401 = vadd.xlane.f32.xlu0 %v1400
        %v1402 = vpop.xlane.xlu0 %1401
        %vm1403 = vcmask 7168
        %1404 = vst.msk [vmem:[%s328] sm:$0xff] %vm1403, %v1402
        %1421 = vset.pattern.permute.xlu0 0
        %1422 = vperm.xlu0 %1421, %v1224
        %v1423 = vpop.permute.xlu0 %1422
        %1424 = vset.pattern.permute.xlu0 0
        %1425 = vperm.xlu0 %1424, %v1225
        %v1426 = vpop.permute.xlu0 %1425
        %1427 = vset.pattern.permute.xlu0 0
        %1428 = vperm.xlu0 %1427, %v1226
        %v1429 = vpop.permute.xlu0 %1428
        %1430 = vset.pattern.permute.xlu0 0
        %1431 = vperm.xlu0 %1430, %v1227
        %v1432 = vpop.permute.xlu0 %1431
        %1433 = vset.pattern.permute.xlu0 0
        %1434 = vperm.xlu0 %1433, %v1228
        %v1435 = vpop.permute.xlu0 %1434
        %1436 = vset.pattern.permute.xlu0 0
        %1437 = vperm.xlu0 %1436, %v1229
        %v1438 = vpop.permute.xlu0 %1437
        %1439 = vset.pattern.permute.xlu0 0
        %1440 = vperm.xlu0 %1439, %v1230
        %v1441 = vpop.permute.xlu0 %1440
        %1442 = vset.pattern.permute.xlu0 0
        %1443 = vperm.xlu0 %1442, %v1231
        %v1444 = vpop.permute.xlu0 %1443
        %1445 = vset.pattern.permute.xlu0 0
        %1446 = vperm.xlu0 %1445, %v1232
        %v1447 = vpop.permute.xlu0 %1446
        %1448 = vset.pattern.permute.xlu0 0
        %1449 = vperm.xlu0 %1448, %v1233
        %v1450 = vpop.permute.xlu0 %1449
        %1451 = vset.pattern.permute.xlu0 0
        %1452 = vperm.xlu0 %1451, %v1234
        %v1453 = vpop.permute.xlu0 %1452
        %1454 = vset.pattern.permute.xlu0 0
        %1455 = vperm.xlu0 %1454, %v1235
        %v1456 = vpop.permute.xlu0 %1455
        %1457 = vset.pattern.permute.xlu0 0
        %1458 = vperm.xlu0 %1457, %v1236
        %v1459 = vpop.permute.xlu0 %1458
        %1460 = vset.pattern.permute.xlu0 0
        %1461 = vperm.xlu0 %1460, %v1237
        %v1462 = vpop.permute.xlu0 %1461
        %1463 = vset.pattern.permute.xlu0 0
        %1464 = vperm.xlu0 %1463, %v1238
        %v1465 = vpop.permute.xlu0 %1464
        %1466 = vset.pattern.permute.xlu0 0
        %1467 = vperm.xlu0 %1466, %v1239
        %v1468 = vpop.permute.xlu0 %1467
        %v1469 = vlaneseq
        %v1470 = vshrl.u32 %v1469, 7
        %v1471 = vsub.s32 %v658, %v1470
        %v1472 = vrot.slane %v1423, %v1471
        %v1473 = vlaneseq
        %v1474 = vshrl.u32 %v1473, 7
        %v1475 = vsub.s32 %v855, %v1474
        %v1476 = vrot.slane %v1426, %v1475
        %v1477 = vsel %vm860, %v1476, %v1472
        %v1478 = vlaneseq
        %v1479 = vshrl.u32 %v1478, 7
        %v1480 = vsub.s32 %v658, %v1479
        %v1481 = vrot.slane %v1429, %v1480
        %v1482 = vlaneseq
        %v1483 = vshrl.u32 %v1482, 7
        %v1484 = vsub.s32 %v855, %v1483
        %v1485 = vrot.slane %v1432, %v1484
        %v1486 = vsel %vm860, %v1485, %v1481
        %v1487 = vlaneseq
        %v1488 = vshrl.u32 %v1487, 7
        %v1489 = vsub.s32 %v658, %v1488
        %v1490 = vrot.slane %v1435, %v1489
        %v1491 = vlaneseq
        %v1492 = vshrl.u32 %v1491, 7
        %v1493 = vsub.s32 %v855, %v1492
        %v1494 = vrot.slane %v1438, %v1493
        %v1495 = vsel %vm860, %v1494, %v1490
        %v1496 = vlaneseq
        %v1497 = vshrl.u32 %v1496, 7
        %v1498 = vsub.s32 %v658, %v1497
        %v1499 = vrot.slane %v1441, %v1498
        %v1500 = vlaneseq
        %v1501 = vshrl.u32 %v1500, 7
        %v1502 = vsub.s32 %v855, %v1501
        %v1503 = vrot.slane %v1444, %v1502
        %v1504 = vsel %vm860, %v1503, %v1499
        %v1505 = vlaneseq
        %v1506 = vshrl.u32 %v1505, 7
        %v1507 = vsub.s32 %v658, %v1506
        %v1508 = vrot.slane %v1447, %v1507
        %v1509 = vlaneseq
        %v1510 = vshrl.u32 %v1509, 7
        %v1511 = vsub.s32 %v855, %v1510
        %v1512 = vrot.slane %v1450, %v1511
        %v1513 = vsel %vm860, %v1512, %v1508
        %v1514 = vlaneseq
        %v1515 = vshrl.u32 %v1514, 7
        %v1516 = vsub.s32 %v658, %v1515
        %v1517 = vrot.slane %v1453, %v1516
        %v1518 = vlaneseq
        %v1519 = vshrl.u32 %v1518, 7
        %v1520 = vsub.s32 %v855, %v1519
        %v1521 = vrot.slane %v1456, %v1520
        %v1522 = vsel %vm860, %v1521, %v1517
        %v1523 = vlaneseq
        %v1524 = vshrl.u32 %v1523, 7
        %v1525 = vsub.s32 %v658, %v1524
        %v1526 = vrot.slane %v1459, %v1525
        %v1527 = vlaneseq
        %v1528 = vshrl.u32 %v1527, 7
        %v1529 = vsub.s32 %v855, %v1528
        %v1530 = vrot.slane %v1462, %v1529
        %v1531 = vsel %vm860, %v1530, %v1526
        %v1532 = vlaneseq
        %v1533 = vshrl.u32 %v1532, 7
        %v1534 = vsub.s32 %v658, %v1533
        %v1535 = vrot.slane %v1465, %v1534
        %v1536 = vlaneseq
        %v1537 = vshrl.u32 %v1536, 7
        %v1538 = vsub.s32 %v855, %v1537
        %v1539 = vrot.slane %v1468, %v1538
        %v1540 = vsel %vm860, %v1539, %v1535
        %v1541 = vsel %vm925, %v1486, %v1477
        %v1542 = vsel %vm927, %v1495, %v1541
        %v1543 = vsel %vm929, %v1504, %v1542
        %v1544 = vsel %vm931, %v1513, %v1543
        %v1545 = vsel %vm933, %v1522, %v1544
        %v1546 = vsel %vm935, %v1531, %v1545
        %v1547 = vsel %vm937, %v1540, %v1546
        %1549 = vst.msk [vmem:[%s319] sm:$0xff] %vm589, %v1547
        %p1550 = scmp.lt.s32.totalorder %s27, 1
        %s1551 = scalar_select %p1550, %s27, 1
        %s1552 = smul.addr %s1551, 8
        %s1553 = scalar_lea.vmem %s6, %s1552
        %s1554 = sand.u32 %s197, 1
        %s1555 = scalar_lea.sflag [#allocation5], %s1554
        %s1556 = sand.u32 %s197, 1
        %s1557 = smul.addr %s1556, 8
        %s1558 = scalar_lea.vmem [#allocation6], %s1557
        // Predicated region
        $region49: #{tpu_custom_call.1} parent=43 // pred_check
          %p1559 = pneg %p181
        $region50: #{tpu_custom_call.1} parent=43 // pred_check_branch
          %1561 = sbr.rel (%p1559) target = $region52
        $region51: #{tpu_custom_call.1} parent=43 // pred_region
          _
        $region52: #{tpu_custom_call.1} parent=43 // pred_fallthru
          _
        // Predicated region
        $region53: #{tpu_custom_call.1} parent=43 // pred_check
          %p1562 = pneg %p207
        $region54: #{tpu_custom_call.1} parent=43 // pred_check_branch
          %1564 = sbr.rel (%p1562) target = $region56
        $region55: #{tpu_custom_call.1} parent=43 // pred_region
          %s1566 = ssub.s32 128, 128
          %1567 = vsyncadd %s1555, %s1566
          %s1568 = smul.addr %s27, 128
          %s1569 = scalar_lea.hbm %s7, %s1568
          %s1571 = sshll.u32 %s1558, 4
          %s1572 = int_to_ptr.vmem [resolvable:$true] %s1571
          %1574 = dma.vmem_to_hbm [thread:$0]  %s1572, 128, %s1569, %s1555
        $region56: #{tpu_custom_call.1} parent=43 // pred_fallthru
          _
      $region44: #{tpu_custom_call.1} parent=5 // pred_fallthru
        _
      %p1575 = scmp.le.s32.totalorder 2, %s22
      // Predicated region
      $region57: #{tpu_custom_call.1} parent=5 // pred_check
        %p1576 = pneg %p1575
      $region58: #{tpu_custom_call.1} parent=5 // pred_check_branch
        %1578 = sbr.rel (%p1576) target = $region60
      $region59: #{tpu_custom_call.1} parent=5 // pred_region
        %s1579 = ssub.s32 %s22, 2
        // Predicated region
        $region61: #{tpu_custom_call.1} parent=59 // pred_check
          %p1580 = pneg %p187
        $region62: #{tpu_custom_call.1} parent=59 // pred_check_branch
          %1582 = sbr.rel (%p1580) target = $region64
        $region63: #{tpu_custom_call.1} parent=59 // pred_region
          %p1583 = scmp.lt.s32.totalorder %s28, 1
          %s1584 = scalar_select %p1583, %s28, 1
          %s1585 = smul.addr %s1584, 8
          %s1586 = scalar_lea.vmem %s6, %s1585
        $region64: #{tpu_custom_call.1} parent=59 // pred_fallthru
          _
        // Predicated region
        $region65: #{tpu_custom_call.1} parent=59 // pred_check
          %p1587 = pneg %p213
        $region66: #{tpu_custom_call.1} parent=59 // pred_check_branch
          %1589 = sbr.rel (%p1587) target = $region68
        $region67: #{tpu_custom_call.1} parent=59 // pred_region
          %s1590 = sand.u32 %s198, 1
          %s1591 = scalar_lea.sflag [#allocation5], %s1590
          %s1592 = sand.u32 %s198, 1
          %s1593 = smul.addr %s1592, 8
          %s1594 = scalar_lea.vmem [#allocation6], %s1593
          %1595 = dma.done %s1591, 128
        $region68: #{tpu_custom_call.1} parent=59 // pred_fallthru
          _
      $region60: #{tpu_custom_call.1} parent=5 // pred_fallthru
        _
    $region6: #{tpu_custom_call.1} parent=1 // loop_footer
      %s26 = sadd.s32 1, %s22
    $region7: #{tpu_custom_call.1} parent=1 // loop_footer_branch
      %21 = sbr.rel target = $region3
    $region8: #{tpu_custom_call.1} parent=1 // loop_exit
      _
    %1596 = vsyncpa [#allocation4], 1
    %s1597 = scalar_lea.sflag [#allocation4], 1
    %1598 = vsyncpa %s1597, 1
    %1599 = vsyncpa [#allocation5], 1
    %s1600 = scalar_lea.sflag [#allocation5], 1
    %1601 = vsyncpa %s1600, 1

</llo_original>
